<compile_context>
chip_gen: v6e
topology: v6e:2x2x1
jax: 0.10.0
libtpu: 0.0.40
codegen_flags: <defaults>
</compile_context>

<pallas_src>
import jax
import jax.numpy as jnp
from jax.experimental import pallas as pl
from jax.experimental.pallas import tpu as pltpu

NUM_CLASSES = 10
_LANE = 128


def _make_fused_kernel(num_mm_layers, Bt, N):
    """Whole-model kernel (backbone layers 2..L + ClsOutBlockPointnet) for one batch tile."""

    def kernel(*refs):
        xyz_ref, x1_ref = refs[0], refs[1]
        layer_refs = [(refs[2 + 2 * i], refs[3 + 2 * i]) for i in range(num_mm_layers)]
        (wlb_ref, bl_ref, wxyz_ref, bpn_ref, wfeatb_ref, wattb_ref,
         expand_ref, collapse_ref, wfc1_ref, bfc1_ref, wfc2_ref, bfc2_ref,
         o_ref) = refs[2 + 2 * num_mm_layers:]

        rows = Bt * N

        # ---- backbone -----------------------------------------------------
        # Layer 1 (feats == ones) is a per-anchor constant, precomputed at trace time
        # in the wrapper; broadcast once over all (batch, point) rows.
        x = jnp.broadcast_to(x1_ref[...], (rows, x1_ref.shape[1]))        # (Bt*N, A*C1) f32

        # Layers 2..L: anchor mix folded into a Kronecker weight -> ONE lane-dense MXU
        # matmul per layer, bf16 operands, f32 accumulation; BN(eval)=identity -> bias+ReLU.
        for wk_ref, bk_ref in layer_refs:
            acc = jnp.dot(x.astype(jnp.bfloat16), wk_ref[...],
                          preferred_element_type=jnp.float32)
            x = jax.nn.relu(acc + bk_ref[...])                            # (Bt*N, A*Cout)

        # ---- outblock: ClsOutBlockPointnet ---------------------------------
        # per-point / per-anchor linear (anchor-block-diagonal weight) + ReLU
        h = jax.nn.relu(
            jnp.dot(x.astype(jnp.bfloat16), wlb_ref[...],
                    preferred_element_type=jnp.float32) + bl_ref[...])    # (Bt*N, A*Cl)

        # PointnetSO3Conv: concat(xyz, feat) @ W == feat @ W_feat (block-diag, MXU)
        #                  + xyz @ W_xyz (K=3, unrolled on the VPU) + bias.
        p = jnp.dot(h.astype(jnp.bfloat16), wfeatb_ref[...],
                    preferred_element_type=jnp.float32)                   # (Bt*N, A*Cp)
        xyz = xyz_ref[...]                                                # (Bt*N, 3) f32
        pxb = bpn_ref[...] + xyz[:, 0:1] * wxyz_ref[0:1, :]
        pxb = pxb + xyz[:, 1:2] * wxyz_ref[1:2, :]
        pxb = pxb + xyz[:, 2:3] * wxyz_ref[2:3, :]
        p = p + pxb

        # PointNet max over points: one sublane reduce per batch tile.
        cw = p.shape[1]
        fa = jax.nn.relu(jnp.max(p.reshape(Bt, N, cw), axis=1))           # (Bt, A*Cp)

        # anchor-attention logits: one stacked (Bt, A*Cp) x (A*Cp, A) matmul.
        logits_a = jnp.dot(fa.astype(jnp.bfloat16), wattb_ref[...],
                           preferred_element_type=jnp.float32)            # (Bt, A)

        # softmax over anchors (vectorized; single approx EUP reciprocal).
        m = jnp.max(logits_a, axis=1, keepdims=True)
        e = jnp.exp(logits_a - m)
        z = jnp.sum(e, axis=1, keepdims=True)
        attn = e * pl.reciprocal(z, approx=True)                          # (Bt, A)

        # attention-weighted anchor pooling, vectorized:
        #   pooled[b, d] = sum_a attn[b, a] * fa[b, a*Cp + d]
        attn_wide = jnp.dot(attn, expand_ref[...],
                            preferred_element_type=jnp.float32)           # (Bt, A*Cp)
        pooled = jnp.dot(attn_wide * fa, collapse_ref[...],
                         preferred_element_type=jnp.float32)              # (Bt, Cp)

        # classifier MLP; final layer padded to 128 lanes -> one unmasked lane-dense store.
        h1 = jax.nn.relu(
            jnp.dot(pooled.astype(jnp.bfloat16), wfc1_ref[...],
                    preferred_element_type=jnp.float32) + bfc1_ref[...])
        out = jnp.dot(h1.astype(jnp.bfloat16), wfc2_ref[...],
                      preferred_element_type=jnp.float32) + bfc2_ref[...]
        o_ref[...] = out.astype(o_ref.dtype)                              # (Bt, 128)

    return kernel


# ---------------------------------------------------------------------------
# Model wrapper (trace-time algebraic folding + single fused pallas_call)
# ---------------------------------------------------------------------------
def cls_so3_conv_model(x, pose, params, rlabel=None):
    """x: (B, N, 3) point cloud; pose unused (see TODO above). Returns logits (B, NUM_CLASSES)."""
    del pose, rlabel
    B, N, _ = x.shape
    A = params['na']
    backbone = params['backbone']
    ob = params['outblock']
    ncls = ob['wfc2'].shape[1]

    f32, bf16 = jnp.float32, jnp.bfloat16

    # ---- layer 1 precompute (feats == ones -> per-anchor constant row) ------
    w1, b1, amix1 = backbone[0]
    rowsum = jnp.sum(amix1, axis=1, keepdims=True)                        # (A, 1)
    x1 = jax.nn.relu(rowsum * w1[0:1, :] + b1)                            # (A, C1)
    x1_flat = x1.reshape(1, -1).astype(f32)                               # (1, A*C1)

    # ---- layers 2..L: Kronecker fold of the intra-anchor mix ---------------
    layer_args = []
    for (w, b, amix) in backbone[1:]:
        wk = jnp.kron(amix.T, w).astype(bf16)                             # (A*Cin, A*Cout)
        bk = jnp.tile(b, (1, A)).astype(f32)                              # (1, A*Cout)
        layer_args += [wk, bk]

    eye_a = jnp.eye(A, dtype=f32)
    cp = ob['wpn_feat'].shape[1]
    ch = ob['wfc1'].shape[1]

    wlb = jnp.kron(eye_a, ob['wl']).astype(bf16)                          # (A*Cin, A*Cl)
    bl_t = jnp.tile(ob['bl'], (1, A)).astype(f32)
    wxyz_t = jnp.tile(ob['wpn_xyz'], (1, A)).astype(f32)                  # (3, A*Cp)
    bpn_t = jnp.tile(ob['bpn'], (1, A)).astype(f32)
    wfeatb = jnp.kron(eye_a, ob['wpn_feat']).astype(bf16)                 # (A*Cl, A*Cp)
    wattb = jnp.kron(eye_a, ob['watt'].T).astype(bf16)                    # (A*Cp, A)
    expand = jnp.kron(eye_a, jnp.ones((1, cp), f32))                      # (A, A*Cp)
    collapse = jnp.kron(jnp.ones((A, 1), f32), jnp.eye(cp, dtype=f32))    # (A*Cp, Cp)

    ncls_pad = max(_LANE, ((ncls + _LANE - 1) // _LANE) * _LANE)
    wfc2_pad = jnp.zeros((ch, ncls_pad), f32).at[:, :ncls].set(ob['wfc2']).astype(bf16)
    bfc2_pad = jnp.zeros((1, ncls_pad), f32).at[:, :ncls].set(ob['bfc2'])

    # ---- batch folding: several batch elements per grid step ----------------
    Bt = B if B <= 8 else 8
    b_pad = -(-B // Bt) * Bt
    if b_pad != B:
        x = jnp.concatenate([x, jnp.zeros((b_pad - B, N, 3), x.dtype)], axis=0)
    xyz_flat = x.reshape(b_pad * N, 3).astype(f32)

    weight_args = [x1_flat, *layer_args, wlb, bl_t, wxyz_t, bpn_t, wfeatb, wattb,
                   expand, collapse, ob['wfc1'].astype(bf16), ob['bfc1'].astype(f32),
                   wfc2_pad, bfc2_pad]

    def full_spec(arr):
        nd = arr.ndim
        return pl.BlockSpec(arr.shape, lambda g, nd=nd: (0,) * nd)

    out = pl.pallas_call(
        _make_fused_kernel(len(backbone) - 1, Bt, N),
        out_shape=jax.ShapeDtypeStruct((b_pad, ncls_pad), f32),
        grid=(b_pad // Bt,),
        in_specs=[pl.BlockSpec((Bt * N, 3), lambda g: (g, 0))]            # xyz rows per batch tile
                 + [full_spec(a) for a in weight_args],                    # resident weights
        out_specs=pl.BlockSpec((Bt, ncls_pad), lambda g: (g, 0)),
        compiler_params=pltpu.CompilerParams(
            dimension_semantics=("parallel",)),                            # v7x: shard batch tiles
    )(xyz_flat, *weight_args)
    return out[:B, :ncls]                                                  # (B, ncls)


def init_params(key, na=4, cin=1, channels=(32, 32, 64),
                cl=64, cp=64, ch=32, ncls=NUM_CLASSES):
    keys = iter(jax.random.split(key, 32))

    def dense(k, fan_in, fan_out):
        return (1.0 / jnp.sqrt(jnp.float32(fan_in))) * jax.random.normal(
            k, (fan_in, fan_out), jnp.float32)

    backbone = []
    prev = cin
    for c in channels:
        w = dense(next(keys), prev, c)
        b = jnp.zeros((1, c), jnp.float32)
        # row-stochastic intra-anchor mixing matrix (stand-in for the anchor-graph conv)
        amix = jax.nn.softmax(jax.random.normal(next(keys), (na, na), jnp.float32), axis=1)
        backbone.append((w, b, amix))
        prev = c

    outblock = dict(
        wl=dense(next(keys), prev, cl), bl=jnp.zeros((1, cl), jnp.float32),
        wpn_xyz=dense(next(keys), 3, cp), wpn_feat=dense(next(keys), cl, cp),
        bpn=jnp.zeros((1, cp), jnp.float32),
        watt=dense(next(keys), 1, cp),                   # attention head (1, Cp)
        wfc1=dense(next(keys), cp, ch), bfc1=jnp.zeros((1, ch), jnp.float32),
        wfc2=dense(next(keys), ch, ncls), bfc2=jnp.zeros((1, ncls), jnp.float32),
    )
    return {'na': na, 'backbone': backbone, 'outblock': outblock}


if __name__ == "__main__":
    key = jax.random.PRNGKey(0)
    kx, kp = jax.random.split(key, 2)

    B, N, NA = 2, 64, 4
    x = jax.random.normal(kx, (B, N, 3), jnp.float32)
    pose = jnp.tile(jnp.eye(4, dtype=jnp.float32)[None, None], (B, N, 1, 1))

    params = init_params(kp, na=NA)

    logits = cls_so3_conv_model(x, pose, params)
    logits = jax.block_until_ready(logits)

    assert logits.shape == (B, NUM_CLASSES), logits.shape
    assert bool(jnp.all(jnp.isfinite(logits)))
    print("KERNEL_OK")
</pallas_src>

<mosaic_0001>
module attributes {stable_mosaic.version = 11 : i64} {
  func.func @kernel(%arg0: i32, %arg1: memref<128x3xf32, #tpu.memory_space<vmem>>, %arg2: memref<1x128xf32, #tpu.memory_space<vmem>>, %arg3: memref<128x128xbf16, #tpu.memory_space<vmem>>, %arg4: memref<1x128xf32, #tpu.memory_space<vmem>>, %arg5: memref<128x256xbf16, #tpu.memory_space<vmem>>, %arg6: memref<1x256xf32, #tpu.memory_space<vmem>>, %arg7: memref<256x256xbf16, #tpu.memory_space<vmem>>, %arg8: memref<1x256xf32, #tpu.memory_space<vmem>>, %arg9: memref<3x256xf32, #tpu.memory_space<vmem>>, %arg10: memref<1x256xf32, #tpu.memory_space<vmem>>, %arg11: memref<256x256xbf16, #tpu.memory_space<vmem>>, %arg12: memref<256x4xbf16, #tpu.memory_space<vmem>>, %arg13: memref<4x256xf32, #tpu.memory_space<vmem>>, %arg14: memref<256x64xf32, #tpu.memory_space<vmem>>, %arg15: memref<64x32xbf16, #tpu.memory_space<vmem>>, %arg16: memref<1x32xf32, #tpu.memory_space<vmem>>, %arg17: memref<32x128xbf16, #tpu.memory_space<vmem>>, %arg18: memref<1x128xf32, #tpu.memory_space<vmem>>, %arg19: memref<2x128xf32, #tpu.memory_space<vmem>>) attributes {dimension_semantics = [#tpu.dimension_semantics<parallel>], iteration_bounds = array<i64: 1>, scalar_prefetch = 0 : i64, scratch_operands = 0 : i64, tpu.core_type = #tpu.core_type<tc>, window_params = [{transform_indices = @transform_0, window_bounds = array<i64: 128, 3>}, {pipeline_mode = #tpu.pipeline_mode<synchronous>, transform_indices = @transform_1, window_bounds = array<i64: 1, 128>}, {pipeline_mode = #tpu.pipeline_mode<synchronous>, transform_indices = @transform_2, window_bounds = array<i64: 128, 128>}, {pipeline_mode = #tpu.pipeline_mode<synchronous>, transform_indices = @transform_3, window_bounds = array<i64: 1, 128>}, {pipeline_mode = #tpu.pipeline_mode<synchronous>, transform_indices = @transform_4, window_bounds = array<i64: 128, 256>}, {pipeline_mode = #tpu.pipeline_mode<synchronous>, transform_indices = @transform_5, window_bounds = array<i64: 1, 256>}, {pipeline_mode = #tpu.pipeline_mode<synchronous>, transform_indices = @transform_6, window_bounds = array<i64: 256, 256>}, {pipeline_mode = #tpu.pipeline_mode<synchronous>, transform_indices = @transform_7, window_bounds = array<i64: 1, 256>}, {pipeline_mode = #tpu.pipeline_mode<synchronous>, transform_indices = @transform_8, window_bounds = array<i64: 3, 256>}, {pipeline_mode = #tpu.pipeline_mode<synchronous>, transform_indices = @transform_9, window_bounds = array<i64: 1, 256>}, {pipeline_mode = #tpu.pipeline_mode<synchronous>, transform_indices = @transform_10, window_bounds = array<i64: 256, 256>}, {pipeline_mode = #tpu.pipeline_mode<synchronous>, transform_indices = @transform_11, window_bounds = array<i64: 256, 4>}, {pipeline_mode = #tpu.pipeline_mode<synchronous>, transform_indices = @transform_12, window_bounds = array<i64: 4, 256>}, {pipeline_mode = #tpu.pipeline_mode<synchronous>, transform_indices = @transform_13, window_bounds = array<i64: 256, 64>}, {pipeline_mode = #tpu.pipeline_mode<synchronous>, transform_indices = @transform_14, window_bounds = array<i64: 64, 32>}, {pipeline_mode = #tpu.pipeline_mode<synchronous>, transform_indices = @transform_15, window_bounds = array<i64: 1, 32>}, {pipeline_mode = #tpu.pipeline_mode<synchronous>, transform_indices = @transform_16, window_bounds = array<i64: 32, 128>}, {pipeline_mode = #tpu.pipeline_mode<synchronous>, transform_indices = @transform_17, window_bounds = array<i64: 1, 128>}, {transform_indices = @transform_18, window_bounds = array<i64: 2, 128>}]} {
    %c0 = arith.constant 0 : index
    %c0_0 = arith.constant 0 : index
    %0 = vector.load %arg2[%c0, %c0_0] : memref<1x128xf32, #tpu.memory_space<vmem>>, vector<1x128xf32>
    %1 = vector.shape_cast %0 : vector<1x128xf32> to vector<1x128xf32>
    %2 = vector.broadcast %1 : vector<1x128xf32> to vector<128x128xf32>
    %3 = arith.truncf %2 : vector<128x128xf32> to vector<128x128xbf16>
    %c0_1 = arith.constant 0 : index
    %c0_2 = arith.constant 0 : index
    %4 = vector.load %arg3[%c0_1, %c0_2] : memref<128x128xbf16, #tpu.memory_space<vmem>>, vector<128x128xbf16>
    %cst = arith.constant dense<0.000000e+00> : vector<128x128xf32>
    %5 = tpu.matmul %3, %4, %cst {dimension_numbers = #tpu.dot_dimension_numbers<[1], [0], [0], [1], [0, 0, 1, 1], [], []>} : vector<128x128xbf16>, vector<128x128xbf16>, vector<128x128xf32> -> vector<128x128xf32>
    %c0_3 = arith.constant 0 : index
    %c0_4 = arith.constant 0 : index
    %6 = vector.load %arg4[%c0_3, %c0_4] : memref<1x128xf32, #tpu.memory_space<vmem>>, vector<1x128xf32>
    %7 = vector.broadcast %6 : vector<1x128xf32> to vector<128x128xf32>
    %8 = arith.addf %5, %7 : vector<128x128xf32>
    %cst_5 = arith.constant 0.000000e+00 : f32
    %9 = vector.broadcast %cst_5 : f32 to vector<128x128xf32>
    %10 = arith.maximumf %8, %9 : vector<128x128xf32>
    %11 = arith.truncf %10 : vector<128x128xf32> to vector<128x128xbf16>
    %c0_6 = arith.constant 0 : index
    %c0_7 = arith.constant 0 : index
    %12 = vector.load %arg5[%c0_6, %c0_7] : memref<128x256xbf16, #tpu.memory_space<vmem>>, vector<128x256xbf16>
    %cst_8 = arith.constant dense<0.000000e+00> : vector<128x256xf32>
    %13 = tpu.matmul %11, %12, %cst_8 {dimension_numbers = #tpu.dot_dimension_numbers<[1], [0], [0], [1], [0, 0, 1, 1], [], []>} : vector<128x128xbf16>, vector<128x256xbf16>, vector<128x256xf32> -> vector<128x256xf32>
    %c0_9 = arith.constant 0 : index
    %c0_10 = arith.constant 0 : index
    %14 = vector.load %arg6[%c0_9, %c0_10] : memref<1x256xf32, #tpu.memory_space<vmem>>, vector<1x256xf32>
    %15 = vector.broadcast %14 : vector<1x256xf32> to vector<128x256xf32>
    %16 = arith.addf %13, %15 : vector<128x256xf32>
    %cst_11 = arith.constant 0.000000e+00 : f32
    %17 = vector.broadcast %cst_11 : f32 to vector<128x256xf32>
    %18 = arith.maximumf %16, %17 : vector<128x256xf32>
    %19 = arith.truncf %18 : vector<128x256xf32> to vector<128x256xbf16>
    %c0_12 = arith.constant 0 : index
    %c0_13 = arith.constant 0 : index
    %20 = vector.load %arg7[%c0_12, %c0_13] : memref<256x256xbf16, #tpu.memory_space<vmem>>, vector<256x256xbf16>
    %cst_14 = arith.constant dense<0.000000e+00> : vector<128x256xf32>
    %21 = tpu.matmul %19, %20, %cst_14 {dimension_numbers = #tpu.dot_dimension_numbers<[1], [0], [0], [1], [0, 0, 1, 1], [], []>} : vector<128x256xbf16>, vector<256x256xbf16>, vector<128x256xf32> -> vector<128x256xf32>
    %c0_15 = arith.constant 0 : index
    %c0_16 = arith.constant 0 : index
    %22 = vector.load %arg8[%c0_15, %c0_16] : memref<1x256xf32, #tpu.memory_space<vmem>>, vector<1x256xf32>
    %23 = vector.broadcast %22 : vector<1x256xf32> to vector<128x256xf32>
    %24 = arith.addf %21, %23 : vector<128x256xf32>
    %cst_17 = arith.constant 0.000000e+00 : f32
    %25 = vector.broadcast %cst_17 : f32 to vector<128x256xf32>
    %26 = arith.maximumf %24, %25 : vector<128x256xf32>
    %27 = arith.truncf %26 : vector<128x256xf32> to vector<128x256xbf16>
    %c0_18 = arith.constant 0 : index
    %c0_19 = arith.constant 0 : index
    %28 = vector.load %arg11[%c0_18, %c0_19] : memref<256x256xbf16, #tpu.memory_space<vmem>>, vector<256x256xbf16>
    %cst_20 = arith.constant dense<0.000000e+00> : vector<128x256xf32>
    %29 = tpu.matmul %27, %28, %cst_20 {dimension_numbers = #tpu.dot_dimension_numbers<[1], [0], [0], [1], [0, 0, 1, 1], [], []>} : vector<128x256xbf16>, vector<256x256xbf16>, vector<128x256xf32> -> vector<128x256xf32>
    %c0_21 = arith.constant 0 : index
    %c0_22 = arith.constant 0 : index
    %30 = vector.load %arg1[%c0_21, %c0_22] : memref<128x3xf32, #tpu.memory_space<vmem>>, vector<128x3xf32>
    %c0_23 = arith.constant 0 : index
    %c0_24 = arith.constant 0 : index
    %31 = vector.load %arg10[%c0_23, %c0_24] : memref<1x256xf32, #tpu.memory_space<vmem>>, vector<1x256xf32>
    %32 = vector.extract_strided_slice %30 {offsets = [0, 0], sizes = [128, 1], strides = [1, 1]} : vector<128x3xf32> to vector<128x1xf32>
    %c0_25 = arith.constant 0 : index
    %c0_26 = arith.constant 0 : index
    %33 = vector.load %arg9[%c0_25, %c0_26] : memref<3x256xf32, #tpu.memory_space<vmem>>, vector<1x256xf32>
    %34 = vector.broadcast %32 : vector<128x1xf32> to vector<128x256xf32>
    %35 = vector.broadcast %33 : vector<1x256xf32> to vector<128x256xf32>
    %36 = arith.mulf %34, %35 : vector<128x256xf32>
    %37 = vector.broadcast %31 : vector<1x256xf32> to vector<128x256xf32>
    %38 = arith.addf %37, %36 : vector<128x256xf32>
    %39 = vector.extract_strided_slice %30 {offsets = [0, 1], sizes = [128, 1], strides = [1, 1]} : vector<128x3xf32> to vector<128x1xf32>
    %c1 = arith.constant 1 : index
    %c0_27 = arith.constant 0 : index
    %40 = vector.load %arg9[%c1, %c0_27] : memref<3x256xf32, #tpu.memory_space<vmem>>, vector<1x256xf32>
    %41 = vector.broadcast %39 : vector<128x1xf32> to vector<128x256xf32>
    %42 = vector.broadcast %40 : vector<1x256xf32> to vector<128x256xf32>
    %43 = arith.mulf %41, %42 : vector<128x256xf32>
    %44 = arith.addf %38, %43 : vector<128x256xf32>
    %45 = vector.extract_strided_slice %30 {offsets = [0, 2], sizes = [128, 1], strides = [1, 1]} : vector<128x3xf32> to vector<128x1xf32>
    %c2 = arith.constant 2 : index
    %c0_28 = arith.constant 0 : index
    %46 = vector.load %arg9[%c2, %c0_28] : memref<3x256xf32, #tpu.memory_space<vmem>>, vector<1x256xf32>
    %47 = vector.broadcast %45 : vector<128x1xf32> to vector<128x256xf32>
    %48 = vector.broadcast %46 : vector<1x256xf32> to vector<128x256xf32>
    %49 = arith.mulf %47, %48 : vector<128x256xf32>
    %50 = arith.addf %44, %49 : vector<128x256xf32>
    %51 = arith.addf %29, %50 : vector<128x256xf32>
    %52 = vector.shape_cast %51 : vector<128x256xf32> to vector<2x64x256xf32>
    %cst_29 = arith.constant dense<0xFF800000> : vector<2x256xf32>
    %53 = vector.multi_reduction <maximumf>, %52, %cst_29 [1] : vector<2x64x256xf32> to vector<2x256xf32>
    %cst_30 = arith.constant 0.000000e+00 : f32
    %54 = vector.broadcast %cst_30 : f32 to vector<2x256xf32>
    %55 = arith.maximumf %53, %54 : vector<2x256xf32>
    %56 = arith.truncf %55 : vector<2x256xf32> to vector<2x256xbf16>
    %c0_31 = arith.constant 0 : index
    %c0_32 = arith.constant 0 : index
    %57 = vector.load %arg12[%c0_31, %c0_32] : memref<256x4xbf16, #tpu.memory_space<vmem>>, vector<256x4xbf16>
    %cst_33 = arith.constant dense<0.000000e+00> : vector<2x4xf32>
    %58 = tpu.matmul %56, %57, %cst_33 {dimension_numbers = #tpu.dot_dimension_numbers<[1], [0], [0], [1], [0, 0, 1, 1], [], []>} : vector<2x256xbf16>, vector<256x4xbf16>, vector<2x4xf32> -> vector<2x4xf32>
    %cst_34 = arith.constant dense<0xFF800000> : vector<2xf32>
    %59 = vector.multi_reduction <maximumf>, %58, %cst_34 [1] : vector<2x4xf32> to vector<2xf32>
    %60 = vector.shape_cast %59 : vector<2xf32> to vector<2x1xf32>
    %61 = vector.broadcast %60 : vector<2x1xf32> to vector<2x4xf32>
    %62 = arith.subf %58, %61 : vector<2x4xf32>
    %63 = math.exp %62 : vector<2x4xf32>
    %cst_35 = arith.constant dense<0.000000e+00> : vector<2xf32>
    %64 = vector.multi_reduction <add>, %63, %cst_35 [1] : vector<2x4xf32> to vector<2xf32>
    %65 = vector.shape_cast %64 : vector<2xf32> to vector<2x1xf32>
    %66 = tpu.reciprocal %65 {approx = true} : vector<2x1xf32> -> vector<2x1xf32>
    %67 = vector.broadcast %66 : vector<2x1xf32> to vector<2x4xf32>
    %68 = arith.mulf %63, %67 : vector<2x4xf32>
    %c0_36 = arith.constant 0 : index
    %c0_37 = arith.constant 0 : index
    %69 = vector.load %arg13[%c0_36, %c0_37] : memref<4x256xf32, #tpu.memory_space<vmem>>, vector<4x256xf32>
    %cst_38 = arith.constant dense<0.000000e+00> : vector<2x256xf32>
    %70 = tpu.matmul %68, %69, %cst_38 {dimension_numbers = #tpu.dot_dimension_numbers<[1], [0], [0], [1], [0, 0, 1, 1], [], []>} : vector<2x4xf32>, vector<4x256xf32>, vector<2x256xf32> -> vector<2x256xf32>
    %71 = arith.mulf %70, %55 : vector<2x256xf32>
    %c0_39 = arith.constant 0 : index
    %c0_40 = arith.constant 0 : index
    %72 = vector.load %arg14[%c0_39, %c0_40] : memref<256x64xf32, #tpu.memory_space<vmem>>, vector<256x64xf32>
    %cst_41 = arith.constant dense<0.000000e+00> : vector<2x64xf32>
    %73 = tpu.matmul %71, %72, %cst_41 {dimension_numbers = #tpu.dot_dimension_numbers<[1], [0], [0], [1], [0, 0, 1, 1], [], []>} : vector<2x256xf32>, vector<256x64xf32>, vector<2x64xf32> -> vector<2x64xf32>
    %74 = arith.truncf %73 : vector<2x64xf32> to vector<2x64xbf16>
    %c0_42 = arith.constant 0 : index
    %c0_43 = arith.constant 0 : index
    %75 = vector.load %arg15[%c0_42, %c0_43] : memref<64x32xbf16, #tpu.memory_space<vmem>>, vector<64x32xbf16>
    %cst_44 = arith.constant dense<0.000000e+00> : vector<2x32xf32>
    %76 = tpu.matmul %74, %75, %cst_44 {dimension_numbers = #tpu.dot_dimension_numbers<[1], [0], [0], [1], [0, 0, 1, 1], [], []>} : vector<2x64xbf16>, vector<64x32xbf16>, vector<2x32xf32> -> vector<2x32xf32>
    %c0_45 = arith.constant 0 : index
    %c0_46 = arith.constant 0 : index
    %77 = vector.load %arg16[%c0_45, %c0_46] : memref<1x32xf32, #tpu.memory_space<vmem>>, vector<1x32xf32>
    %78 = vector.broadcast %77 : vector<1x32xf32> to vector<2x32xf32>
    %79 = arith.addf %76, %78 : vector<2x32xf32>
    %cst_47 = arith.constant 0.000000e+00 : f32
    %80 = vector.broadcast %cst_47 : f32 to vector<2x32xf32>
    %81 = arith.maximumf %79, %80 : vector<2x32xf32>
    %82 = arith.truncf %81 : vector<2x32xf32> to vector<2x32xbf16>
    %c0_48 = arith.constant 0 : index
    %c0_49 = arith.constant 0 : index
    %83 = vector.load %arg17[%c0_48, %c0_49] : memref<32x128xbf16, #tpu.memory_space<vmem>>, vector<32x128xbf16>
    %cst_50 = arith.constant dense<0.000000e+00> : vector<2x128xf32>
    %84 = tpu.matmul %82, %83, %cst_50 {dimension_numbers = #tpu.dot_dimension_numbers<[1], [0], [0], [1], [0, 0, 1, 1], [], []>} : vector<2x32xbf16>, vector<32x128xbf16>, vector<2x128xf32> -> vector<2x128xf32>
    %c0_51 = arith.constant 0 : index
    %c0_52 = arith.constant 0 : index
    %85 = vector.load %arg18[%c0_51, %c0_52] : memref<1x128xf32, #tpu.memory_space<vmem>>, vector<1x128xf32>
    %86 = vector.broadcast %85 : vector<1x128xf32> to vector<2x128xf32>
    %87 = arith.addf %84, %86 : vector<2x128xf32>
    %c0_53 = arith.constant 0 : index
    %c0_54 = arith.constant 0 : index
    %88 = vector.load %arg19[%c0_53, %c0_54] : memref<2x128xf32, #tpu.memory_space<vmem>>, vector<2x128xf32>
    tpu.vector_store %arg19[%c0_53, %c0_54], %87 {strides = array<i32>} : memref<2x128xf32, #tpu.memory_space<vmem>>, vector<2x128xf32>,
    return
  }
  func.func @transform_0(%arg0: i32) -> (i32, i32) {
    %c0_i32 = arith.constant 0 : i32
    %c0_i32_0 = arith.constant 0 : i32
    return %arg0, %c0_i32 : i32, i32
  }
  func.func @transform_1(%arg0: i32) -> (i32, i32) {
    %c0_i32 = arith.constant 0 : i32
    %c0_i32_0 = arith.constant 0 : i32
    %c0_i32_1 = arith.constant 0 : i32
    return %c0_i32, %c0_i32_0 : i32, i32
  }
  func.func @transform_2(%arg0: i32) -> (i32, i32) {
    %c0_i32 = arith.constant 0 : i32
    %c0_i32_0 = arith.constant 0 : i32
    %c0_i32_1 = arith.constant 0 : i32
    return %c0_i32, %c0_i32_0 : i32, i32
  }
  func.func @transform_3(%arg0: i32) -> (i32, i32) {
    %c0_i32 = arith.constant 0 : i32
    %c0_i32_0 = arith.constant 0 : i32
    %c0_i32_1 = arith.constant 0 : i32
    return %c0_i32, %c0_i32_0 : i32, i32
  }
  func.func @transform_4(%arg0: i32) -> (i32, i32) {
    %c0_i32 = arith.constant 0 : i32
    %c0_i32_0 = arith.constant 0 : i32
    %c0_i32_1 = arith.constant 0 : i32
    return %c0_i32, %c0_i32_0 : i32, i32
  }
  func.func @transform_5(%arg0: i32) -> (i32, i32) {
    %c0_i32 = arith.constant 0 : i32
    %c0_i32_0 = arith.constant 0 : i32
    %c0_i32_1 = arith.constant 0 : i32
    return %c0_i32, %c0_i32_0 : i32, i32
  }
  func.func @transform_6(%arg0: i32) -> (i32, i32) {
    %c0_i32 = arith.constant 0 : i32
    %c0_i32_0 = arith.constant 0 : i32
    %c0_i32_1 = arith.constant 0 : i32
    return %c0_i32, %c0_i32_0 : i32, i32
  }
  func.func @transform_7(%arg0: i32) -> (i32, i32) {
    %c0_i32 = arith.constant 0 : i32
    %c0_i32_0 = arith.constant 0 : i32
    %c0_i32_1 = arith.constant 0 : i32
    return %c0_i32, %c0_i32_0 : i32, i32
  }
  func.func @transform_8(%arg0: i32) -> (i32, i32) {
    %c0_i32 = arith.constant 0 : i32
    %c0_i32_0 = arith.constant 0 : i32
    %c0_i32_1 = arith.constant 0 : i32
    return %c0_i32, %c0_i32_0 : i32, i32
  }
  func.func @transform_9(%arg0: i32) -> (i32, i32) {
    %c0_i32 = arith.constant 0 : i32
    %c0_i32_0 = arith.constant 0 : i32
    %c0_i32_1 = arith.constant 0 : i32
    return %c0_i32, %c0_i32_0 : i32, i32
  }
  func.func @transform_10(%arg0: i32) -> (i32, i32) {
    %c0_i32 = arith.constant 0 : i32
    %c0_i32_0 = arith.constant 0 : i32
    %c0_i32_1 = arith.constant 0 : i32
    return %c0_i32, %c0_i32_0 : i32, i32
  }
  func.func @transform_11(%arg0: i32) -> (i32, i32) {
    %c0_i32 = arith.constant 0 : i32
    %c0_i32_0 = arith.constant 0 : i32
    %c0_i32_1 = arith.constant 0 : i32
    return %c0_i32, %c0_i32_0 : i32, i32
  }
  func.func @transform_12(%arg0: i32) -> (i32, i32) {
    %c0_i32 = arith.constant 0 : i32
    %c0_i32_0 = arith.constant 0 : i32
    %c0_i32_1 = arith.constant 0 : i32
    return %c0_i32, %c0_i32_0 : i32, i32
  }
  func.func @transform_13(%arg0: i32) -> (i32, i32) {
    %c0_i32 = arith.constant 0 : i32
    %c0_i32_0 = arith.constant 0 : i32
    %c0_i32_1 = arith.constant 0 : i32
    return %c0_i32, %c0_i32_0 : i32, i32
  }
  func.func @transform_14(%arg0: i32) -> (i32, i32) {
    %c0_i32 = arith.constant 0 : i32
    %c0_i32_0 = arith.constant 0 : i32
    %c0_i32_1 = arith.constant 0 : i32
    return %c0_i32, %c0_i32_0 : i32, i32
  }
  func.func @transform_15(%arg0: i32) -> (i32, i32) {
    %c0_i32 = arith.constant 0 : i32
    %c0_i32_0 = arith.constant 0 : i32
    %c0_i32_1 = arith.constant 0 : i32
    return %c0_i32, %c0_i32_0 : i32, i32
  }
  func.func @transform_16(%arg0: i32) -> (i32, i32) {
    %c0_i32 = arith.constant 0 : i32
    %c0_i32_0 = arith.constant 0 : i32
    %c0_i32_1 = arith.constant 0 : i32
    return %c0_i32, %c0_i32_0 : i32, i32
  }
  func.func @transform_17(%arg0: i32) -> (i32, i32) {
    %c0_i32 = arith.constant 0 : i32
    %c0_i32_0 = arith.constant 0 : i32
    %c0_i32_1 = arith.constant 0 : i32
    return %c0_i32, %c0_i32_0 : i32, i32
  }
  func.func @transform_18(%arg0: i32) -> (i32, i32) {
    %c0_i32 = arith.constant 0 : i32
    %c0_i32_0 = arith.constant 0 : i32
    return %arg0, %c0_i32 : i32, i32
  }
}

</mosaic_0001>

<llo_original>
// kernel: tpu_custom_call.1
$region0: #{tpu_custom_call.1}
  #allocation0 [shape = 'u32[]', space=smem, size = 0x4, offset = 0x4, fixed_abs, tag = 'smem constant byte address 0x4 - core index']
  #allocation1 [shape = 'u32[144,128]{1,0:T(1,128)}', space=vmem, size = 0x12000, scoped, tag = 'internal scratch']
  %s0 = inlined_call_operand.vmem [shape: f32[128,3], index: 0, kind: input, shape index: {}]
  %s1 = inlined_call_operand.vmem [shape: f32[1,128], index: 1, kind: input, shape index: {}]
  %s2 = inlined_call_operand.hbm [shape: bf16[128,128], index: 2, kind: input, shape index: {}]
  %s3 = inlined_call_operand.vmem [shape: f32[1,128], index: 3, kind: input, shape index: {}]
  %s4 = inlined_call_operand.hbm [shape: bf16[128,256], index: 4, kind: input, shape index: {}]
  %s5 = inlined_call_operand.vmem [shape: f32[1,256], index: 5, kind: input, shape index: {}]
  %s6 = inlined_call_operand.vmem [shape: bf16[256,256], index: 6, kind: input, shape index: {}]
  %s7 = inlined_call_operand.vmem [shape: f32[1,256], index: 7, kind: input, shape index: {}]
  %s8 = inlined_call_operand.vmem [shape: f32[3,256], index: 8, kind: input, shape index: {}]
  %s9 = inlined_call_operand.vmem [shape: f32[1,256], index: 9, kind: input, shape index: {}]
  %s10 = inlined_call_operand.vmem [shape: bf16[256,256], index: 10, kind: input, shape index: {}]
  %s11 = inlined_call_operand.vmem [shape: bf16[256,4], index: 11, kind: input, shape index: {}]
  %s12 = inlined_call_operand.vmem [shape: f32[4,256], index: 12, kind: input, shape index: {}]
  %s13 = inlined_call_operand.vmem [shape: f32[256,64], index: 13, kind: input, shape index: {}]
  %s14 = inlined_call_operand.vmem [shape: bf16[64,32], index: 14, kind: input, shape index: {}]
  %s15 = inlined_call_operand.vmem [shape: f32[1,32], index: 15, kind: input, shape index: {}]
  %s16 = inlined_call_operand.vmem [shape: bf16[32,128], index: 16, kind: input, shape index: {}]
  %s17 = inlined_call_operand.vmem [shape: f32[1,128], index: 17, kind: input, shape index: {}]
  %s18 = inlined_call_operand.hbm [shape: f32[2,128], index: 18, kind: output, shape index: {}]
  %s19 = sld [smem:[#allocation0]]
  $region90: #{tpu_custom_call.1} parent=0
    _
  %s21 = ssub.s32 1, %s19
  %s22 = scalar_select 0, %s21, %s19
  $region1: #{tpu_custom_call.1} parent=0
    #allocation2 [shape = 'u8[32768]{0}', space=vmem, size = 0x8000, scoped, tag = 'input window, operand 2, single buffered']
    #allocation3 [shape = 's32[1]{0}', space=sflag, size = 0x4, scoped, tag = 'scoped memory for tpu_custom_call.1']
    #allocation4 [shape = 's32[1]{0}', space=sflag, size = 0x4, scoped, tag = 'scoped memory for tpu_custom_call.1']
    #allocation5 [shape = 'u8[65536]{0}', space=vmem, size = 0x10000, scoped, tag = 'input window, operand 4, single buffered']
    #allocation6 [shape = 's32[1]{0}', space=sflag, size = 0x4, scoped, tag = 'scoped memory for tpu_custom_call.1']
    #allocation7 [shape = 'u8[1024]{0}', space=vmem, size = 0x400, scoped, tag = 'output window, operand 0, single buffered']
    %23 = vsyncpa [#allocation3], 0
    %24 = vsyncpa [#allocation6], 0
    %25 = vsyncpa [#allocation4], 0
    // Predicated region
    $region2: #{tpu_custom_call.1} parent=1 // pred_check
      _
    $region3: #{tpu_custom_call.1} parent=1 // pred_check_branch
      %27 = sbr.rel (0) target = $region5
    $region4: #{tpu_custom_call.1} parent=1 // pred_region
      _
    $region5: #{tpu_custom_call.1} parent=1 // pred_fallthru
      _
    // Predicated region
    $region6: #{tpu_custom_call.1} parent=1 // pred_check
      _
    $region7: #{tpu_custom_call.1} parent=1 // pred_check_branch
      %29 = sbr.rel (0) target = $region9
    $region8: #{tpu_custom_call.1} parent=1 // pred_region
      _
    $region9: #{tpu_custom_call.1} parent=1 // pred_fallthru
      _
    // Predicated region
    $region10: #{tpu_custom_call.1} parent=1 // pred_check
      _
    $region11: #{tpu_custom_call.1} parent=1 // pred_check_branch
      %31 = sbr.rel (0) target = $region13
    $region12: #{tpu_custom_call.1} parent=1 // pred_region
      %s33 = ssub.s32 1024, 1024
      %34 = vsyncadd [#allocation3], %s33
      %s35 = sshll.u32 [#allocation2], 4
      %s36 = int_to_ptr.vmem [resolvable:$true] %s35
      %41 = dma.hbm_to_vmem [thread:$0]  %s2, 1024, %s36, [#allocation3], 64, 64, 4
    $region13: #{tpu_custom_call.1} parent=1 // pred_fallthru
      _
    // Predicated region
    $region14: #{tpu_custom_call.1} parent=1 // pred_check
      _
    $region15: #{tpu_custom_call.1} parent=1 // pred_check_branch
      %43 = sbr.rel (0) target = $region17
    $region16: #{tpu_custom_call.1} parent=1 // pred_region
      _
    $region17: #{tpu_custom_call.1} parent=1 // pred_fallthru
      _
    // Predicated region
    $region18: #{tpu_custom_call.1} parent=1 // pred_check
      _
    $region19: #{tpu_custom_call.1} parent=1 // pred_check_branch
      %45 = sbr.rel (0) target = $region21
    $region20: #{tpu_custom_call.1} parent=1 // pred_region
      %s47 = ssub.s32 2048, 2048
      %48 = vsyncadd [#allocation6], %s47
      %s49 = sshll.u32 [#allocation5], 4
      %s50 = int_to_ptr.vmem [resolvable:$true] %s49
      %55 = dma.hbm_to_vmem [thread:$0]  %s4, 2048, %s50, [#allocation6], 128, 128, 8
    $region21: #{tpu_custom_call.1} parent=1 // pred_fallthru
      _
    // Predicated region
    $region22: #{tpu_custom_call.1} parent=1 // pred_check
      _
    $region23: #{tpu_custom_call.1} parent=1 // pred_check_branch
      %57 = sbr.rel (0) target = $region25
    $region24: #{tpu_custom_call.1} parent=1 // pred_region
      _
    $region25: #{tpu_custom_call.1} parent=1 // pred_fallthru
      _
    // Predicated region
    $region26: #{tpu_custom_call.1} parent=1 // pred_check
      _
    $region27: #{tpu_custom_call.1} parent=1 // pred_check_branch
      %59 = sbr.rel (0) target = $region29
    $region28: #{tpu_custom_call.1} parent=1 // pred_region
      _
    $region29: #{tpu_custom_call.1} parent=1 // pred_fallthru
      _
    // Predicated region
    $region30: #{tpu_custom_call.1} parent=1 // pred_check
      _
    $region31: #{tpu_custom_call.1} parent=1 // pred_check_branch
      %61 = sbr.rel (0) target = $region33
    $region32: #{tpu_custom_call.1} parent=1 // pred_region
      _
    $region33: #{tpu_custom_call.1} parent=1 // pred_fallthru
      _
    // Predicated region
    $region34: #{tpu_custom_call.1} parent=1 // pred_check
      _
    $region35: #{tpu_custom_call.1} parent=1 // pred_check_branch
      %63 = sbr.rel (0) target = $region37
    $region36: #{tpu_custom_call.1} parent=1 // pred_region
      _
    $region37: #{tpu_custom_call.1} parent=1 // pred_fallthru
      _
    // Predicated region
    $region38: #{tpu_custom_call.1} parent=1 // pred_check
      _
    $region39: #{tpu_custom_call.1} parent=1 // pred_check_branch
      %65 = sbr.rel (0) target = $region41
    $region40: #{tpu_custom_call.1} parent=1 // pred_region
      _
    $region41: #{tpu_custom_call.1} parent=1 // pred_fallthru
      _
    // Predicated region
    $region42: #{tpu_custom_call.1} parent=1 // pred_check
      _
    $region43: #{tpu_custom_call.1} parent=1 // pred_check_branch
      %67 = sbr.rel (0) target = $region45
    $region44: #{tpu_custom_call.1} parent=1 // pred_region
      _
    $region45: #{tpu_custom_call.1} parent=1 // pred_fallthru
      _
    // Predicated region
    $region46: #{tpu_custom_call.1} parent=1 // pred_check
      _
    $region47: #{tpu_custom_call.1} parent=1 // pred_check_branch
      %69 = sbr.rel (0) target = $region49
    $region48: #{tpu_custom_call.1} parent=1 // pred_region
      _
    $region49: #{tpu_custom_call.1} parent=1 // pred_fallthru
      _
    // Predicated region
    $region50: #{tpu_custom_call.1} parent=1 // pred_check
      _
    $region51: #{tpu_custom_call.1} parent=1 // pred_check_branch
      %71 = sbr.rel (0) target = $region53
    $region52: #{tpu_custom_call.1} parent=1 // pred_region
      _
    $region53: #{tpu_custom_call.1} parent=1 // pred_fallthru
      _
    // Predicated region
    $region54: #{tpu_custom_call.1} parent=1 // pred_check
      _
    $region55: #{tpu_custom_call.1} parent=1 // pred_check_branch
      %73 = sbr.rel (0) target = $region57
    $region56: #{tpu_custom_call.1} parent=1 // pred_region
      _
    $region57: #{tpu_custom_call.1} parent=1 // pred_fallthru
      _
    // Predicated region
    $region58: #{tpu_custom_call.1} parent=1 // pred_check
      _
    $region59: #{tpu_custom_call.1} parent=1 // pred_check_branch
      %75 = sbr.rel (0) target = $region61
    $region60: #{tpu_custom_call.1} parent=1 // pred_region
      _
    $region61: #{tpu_custom_call.1} parent=1 // pred_fallthru
      _
    // Predicated region
    $region62: #{tpu_custom_call.1} parent=1 // pred_check
      _
    $region63: #{tpu_custom_call.1} parent=1 // pred_check_branch
      %77 = sbr.rel (0) target = $region65
    $region64: #{tpu_custom_call.1} parent=1 // pred_region
      _
    $region65: #{tpu_custom_call.1} parent=1 // pred_fallthru
      _
    // Predicated region
    $region66: #{tpu_custom_call.1} parent=1 // pred_check
      _
    $region67: #{tpu_custom_call.1} parent=1 // pred_check_branch
      %79 = sbr.rel (0) target = $region69
    $region68: #{tpu_custom_call.1} parent=1 // pred_region
      _
    $region69: #{tpu_custom_call.1} parent=1 // pred_fallthru
      _
    // Predicated region
    $region70: #{tpu_custom_call.1} parent=1 // pred_check
      _
    $region71: #{tpu_custom_call.1} parent=1 // pred_check_branch
      %81 = sbr.rel (0) target = $region73
    $region72: #{tpu_custom_call.1} parent=1 // pred_region
      _
    $region73: #{tpu_custom_call.1} parent=1 // pred_fallthru
      _
    // Predicated region
    $region74: #{tpu_custom_call.1} parent=1 // pred_check
      _
    $region75: #{tpu_custom_call.1} parent=1 // pred_check_branch
      %83 = sbr.rel (0) target = $region77
    $region76: #{tpu_custom_call.1} parent=1 // pred_region
      %84 = dma.done [#allocation3], 1024
    $region77: #{tpu_custom_call.1} parent=1 // pred_fallthru
      _
    // Predicated region
    $region78: #{tpu_custom_call.1} parent=1 // pred_check
      _
    $region79: #{tpu_custom_call.1} parent=1 // pred_check_branch
      %86 = sbr.rel (0) target = $region81
    $region80: #{tpu_custom_call.1} parent=1 // pred_region
      %87 = dma.done [#allocation6], 2048
    $region81: #{tpu_custom_call.1} parent=1 // pred_fallthru
      _
    %v89 = vld [vmem:[%s1] sm:$0x1]
    %v91 = vlaneseq
    %v92 = vshrl.u32 %v91, 7
    %v93 = vsub.s32 0, %v92
    %v94 = vrot.slane %v89, %v93
    %v96 = vpack.c.bf16 %v94, %v94
    %v97 = vld [vmem:[#allocation2] sm:$0xf]
    %v98 = vld [vmem:[#allocation2 + $0x4] sm:$0xf]
    %v99 = vld [vmem:[#allocation2 + $0x8] sm:$0xf]
    %v100 = vld [vmem:[#allocation2 + $0xc] sm:$0xf]
    %v101 = vld [vmem:[#allocation2 + $0x10] sm:$0xf]
    %v102 = vld [vmem:[#allocation2 + $0x14] sm:$0xf]
    %v103 = vld [vmem:[#allocation2 + $0x18] sm:$0xf]
    %v104 = vld [vmem:[#allocation2 + $0x1c] sm:$0xf]
    %v105 = vld [vmem:[#allocation2 + $0x20] sm:$0xf]
    %v106 = vld [vmem:[#allocation2 + $0x24] sm:$0xf]
    %v107 = vld [vmem:[#allocation2 + $0x28] sm:$0xf]
    %v108 = vld [vmem:[#allocation2 + $0x2c] sm:$0xf]
    %v109 = vld [vmem:[#allocation2 + $0x30] sm:$0xf]
    %v110 = vld [vmem:[#allocation2 + $0x34] sm:$0xf]
    %v111 = vld [vmem:[#allocation2 + $0x38] sm:$0xf]
    %v112 = vld [vmem:[#allocation2 + $0x3c] sm:$0xf]
    %v113 = vld [vmem:[%s3] sm:$0x1]
    %v115 = vlaneseq
    %v116 = vshrl.u32 %v115, 7
    %v117 = vsub.s32 0, %v116
    %v118 = vrot.slane %v113, %v117
    %v136 = vunpack.c.l.b16 %v97
    %v137 = vunpack.c.l.b16 %v98
    %v138 = vunpack.c.l.b16 %v99
    %v139 = vunpack.c.l.b16 %v100
    %v140 = vunpack.c.l.b16 %v101
    %v141 = vunpack.c.l.b16 %v102
    %v142 = vunpack.c.l.b16 %v103
    %v143 = vunpack.c.l.b16 %v104
    %v144 = vunpack.c.l.b16 %v105
    %v145 = vunpack.c.l.b16 %v106
    %v146 = vunpack.c.l.b16 %v107
    %v147 = vunpack.c.l.b16 %v108
    %v148 = vunpack.c.l.b16 %v109
    %v149 = vunpack.c.l.b16 %v110
    %v150 = vunpack.c.l.b16 %v111
    %v151 = vunpack.c.l.b16 %v112
    %v152 = vpack.c.b16 %v137, %v136
    %v153 = vpack.c.b16 %v139, %v138
    %v154 = vpack.c.b16 %v141, %v140
    %v155 = vpack.c.b16 %v143, %v142
    %v156 = vpack.c.b16 %v145, %v144
    %v157 = vpack.c.b16 %v147, %v146
    %v158 = vpack.c.b16 %v149, %v148
    %v159 = vpack.c.b16 %v151, %v150
    %168 = vmatprep.subr.bf16.mxu0 0
    %169 = vmatpush1.bf16.msra.mxu0 %v159
    %170 = vmatprep.subr.bf16.mxu0 0
    %171 = vmatpush1.bf16.msra.mxu0 %v158
    %172 = vmatprep.subr.bf16.mxu0 0
    %173 = vmatpush1.bf16.msra.mxu0 %v157
    %174 = vmatprep.subr.bf16.mxu0 0
    %175 = vmatpush1.bf16.msra.mxu0 %v156
    %176 = vmatprep.subr.bf16.mxu0 0
    %177 = vmatpush1.bf16.msra.mxu0 %v155
    %178 = vmatprep.subr.bf16.mxu0 0
    %179 = vmatpush1.bf16.msra.mxu0 %v154
    %180 = vmatprep.subr.bf16.mxu0 0
    %181 = vmatpush1.bf16.msra.mxu0 %v153
    %182 = vmatprep.subr.bf16.mxu0 0
    %183 = vmatpush1.bf16.msra.mxu0 %v152
    %184 = vmatprep.subr.bf16.mxu0 0
    %185 = vmatpush2.bf16.msra.mxu0 0
    %186 = vmatprep.subr.bf16.mxu0 0
    %187 = vmatpush2.bf16.msra.mxu0 0
    %188 = vmatprep.subr.bf16.mxu0 0
    %189 = vmatpush2.bf16.msra.mxu0 0
    %190 = vmatprep.subr.bf16.mxu0 0
    %191 = vmatpush2.bf16.msra.mxu0 0
    %192 = vmatprep.subr.bf16.mxu0 0
    %193 = vmatpush2.bf16.msra.mxu0 0
    %194 = vmatprep.subr.bf16.mxu0 0
    %195 = vmatpush2.bf16.msra.mxu0 0
    %196 = vmatprep.subr.bf16.mxu0 0
    %197 = vmatpush2.bf16.msra.mxu0 0
    %198 = vmatprep.subr.bf16.mxu0 0
    %199 = vmatpush2.bf16.msra.mxu0 0
    %200 = vmatprep.mubr.bf16.mxu0 0
    %201 = vmatmul.mubr.bf16.gmra.mxu0 %v96
    %v202 = vpop.f32.mrf.mxu0
    %v203 = vadd.f32 %v118, %v202
    %v204 = vpop.f32.mrf.mxu0
    %v205 = vpop.f32.mrf.mxu0
    %v206 = vadd.f32 %v118, %v205
    %v207 = vpop.f32.mrf.mxu0
    %208 = vmatprep.mubr.bf16.mxu0 0
    %209 = vmatmul.mubr.bf16.gmra.mxu0 %v96
    %v210 = vpop.f32.mrf.mxu0
    %v211 = vadd.f32 %v118, %v210
    %v212 = vpop.f32.mrf.mxu0
    %v213 = vpop.f32.mrf.mxu0
    %v214 = vadd.f32 %v118, %v213
    %v215 = vpop.f32.mrf.mxu0
    %216 = vmatprep.mubr.bf16.mxu0 0
    %217 = vmatmul.mubr.bf16.gmra.mxu0 %v96
    %v218 = vpop.f32.mrf.mxu0
    %v219 = vadd.f32 %v118, %v218
    %v220 = vpop.f32.mrf.mxu0
    %v221 = vpop.f32.mrf.mxu0
    %v222 = vadd.f32 %v118, %v221
    %v223 = vpop.f32.mrf.mxu0
    %224 = vmatprep.mubr.bf16.mxu0 0
    %225 = vmatmul.mubr.bf16.gmra.mxu0 %v96
    %v226 = vpop.f32.mrf.mxu0
    %v227 = vadd.f32 %v118, %v226
    %v228 = vpop.f32.mrf.mxu0
    %v229 = vpop.f32.mrf.mxu0
    %v230 = vadd.f32 %v118, %v229
    %v231 = vpop.f32.mrf.mxu0
    %232 = vmatprep.mubr.bf16.mxu0 0
    %233 = vmatmul.mubr.bf16.gmra.mxu0 %v96
    %v234 = vpop.f32.mrf.mxu0
    %v235 = vadd.f32 %v118, %v234
    %v236 = vpop.f32.mrf.mxu0
    %v237 = vpop.f32.mrf.mxu0
    %v238 = vadd.f32 %v118, %v237
    %v239 = vpop.f32.mrf.mxu0
    %240 = vmatprep.mubr.bf16.mxu0 0
    %241 = vmatmul.mubr.bf16.gmra.mxu0 %v96
    %v242 = vpop.f32.mrf.mxu0
    %v243 = vadd.f32 %v118, %v242
    %v244 = vpop.f32.mrf.mxu0
    %v245 = vpop.f32.mrf.mxu0
    %v246 = vadd.f32 %v118, %v245
    %v247 = vpop.f32.mrf.mxu0
    %248 = vmatprep.mubr.bf16.mxu0 0
    %249 = vmatmul.mubr.bf16.gmra.mxu0 %v96
    %v250 = vpop.f32.mrf.mxu0
    %v251 = vadd.f32 %v118, %v250
    %v252 = vpop.f32.mrf.mxu0
    %v253 = vpop.f32.mrf.mxu0
    %v254 = vadd.f32 %v118, %v253
    %v255 = vpop.f32.mrf.mxu0
    %256 = vmatprep.mubr.bf16.mxu0 0
    %257 = vmatmul.mubr.bf16.gmra.mxu0 %v96
    %v258 = vpop.f32.mrf.mxu0
    %v259 = vadd.f32 %v118, %v258
    %v260 = vpop.f32.mrf.mxu0
    %v261 = vpop.f32.mrf.mxu0
    %v262 = vadd.f32 %v118, %v261
    %v263 = vpop.f32.mrf.mxu0
    %264 = vdwg.mxu0
    %v265 = vmax.f32 %v203, 0.0
    %v266 = vmax.f32 %v206, 0.0
    %v267 = vmax.f32 %v211, 0.0
    %v268 = vmax.f32 %v214, 0.0
    %v269 = vmax.f32 %v219, 0.0
    %v270 = vmax.f32 %v222, 0.0
    %v271 = vmax.f32 %v227, 0.0
    %v272 = vmax.f32 %v230, 0.0
    %v273 = vmax.f32 %v235, 0.0
    %v274 = vmax.f32 %v238, 0.0
    %v275 = vmax.f32 %v243, 0.0
    %v276 = vmax.f32 %v246, 0.0
    %v277 = vmax.f32 %v251, 0.0
    %v278 = vmax.f32 %v254, 0.0
    %v279 = vmax.f32 %v259, 0.0
    %v280 = vmax.f32 %v262, 0.0
    %v281 = vpack.c.bf16 %v266, %v265
    %v282 = vpack.c.bf16 %v268, %v267
    %v283 = vpack.c.bf16 %v270, %v269
    %v284 = vpack.c.bf16 %v272, %v271
    %v285 = vpack.c.bf16 %v274, %v273
    %v286 = vpack.c.bf16 %v276, %v275
    %v287 = vpack.c.bf16 %v278, %v277
    %v288 = vpack.c.bf16 %v280, %v279
    %v289 = vld [vmem:[#allocation5] sm:$0xff]
    %v290 = vld [vmem:[#allocation5 + $0x8] sm:$0xff]
    %v291 = vld [vmem:[#allocation5 + $0x10] sm:$0xff]
    %v292 = vld [vmem:[#allocation5 + $0x18] sm:$0xff]
    %v293 = vld [vmem:[#allocation5 + $0x20] sm:$0xff]
    %v294 = vld [vmem:[#allocation5 + $0x28] sm:$0xff]
    %v295 = vld [vmem:[#allocation5 + $0x30] sm:$0xff]
    %v296 = vld [vmem:[#allocation5 + $0x38] sm:$0xff]
    %v297 = vld [vmem:[#allocation5 + $0x40] sm:$0xff]
    %v298 = vld [vmem:[#allocation5 + $0x48] sm:$0xff]
    %v299 = vld [vmem:[#allocation5 + $0x50] sm:$0xff]
    %v300 = vld [vmem:[#allocation5 + $0x58] sm:$0xff]
    %v301 = vld [vmem:[#allocation5 + $0x60] sm:$0xff]
    %v302 = vld [vmem:[#allocation5 + $0x68] sm:$0xff]
    %v303 = vld [vmem:[#allocation5 + $0x70] sm:$0xff]
    %v304 = vld [vmem:[#allocation5 + $0x78] sm:$0xff]
    %v305 = vld [vmem:[%s5] sm:$0x3]
    %v307 = vlaneseq
    %v308 = vshrl.u32 %v307, 7
    %v309 = vsub.s32 0, %v308
    %v310 = vrot.slane %v305, %v309
    %v311 = vlaneseq
    %v312 = vshrl.u32 %v311, 7
    %v313 = vsub.s32 1, %v312
    %v314 = vrot.slane %v305, %v313
    %v333 = vunpack.c.l.b16 %v289
    %v334 = vunpack.c.h.b16 %v289
    %v335 = vunpack.c.l.b16 %v290
    %v336 = vunpack.c.h.b16 %v290
    %v337 = vunpack.c.l.b16 %v291
    %v338 = vunpack.c.h.b16 %v291
    %v339 = vunpack.c.l.b16 %v292
    %v340 = vunpack.c.h.b16 %v292
    %v341 = vunpack.c.l.b16 %v293
    %v342 = vunpack.c.h.b16 %v293
    %v343 = vunpack.c.l.b16 %v294
    %v344 = vunpack.c.h.b16 %v294
    %v345 = vunpack.c.l.b16 %v295
    %v346 = vunpack.c.h.b16 %v295
    %v347 = vunpack.c.l.b16 %v296
    %v348 = vunpack.c.h.b16 %v296
    %v349 = vunpack.c.l.b16 %v297
    %v350 = vunpack.c.h.b16 %v297
    %v351 = vunpack.c.l.b16 %v298
    %v352 = vunpack.c.h.b16 %v298
    %v353 = vunpack.c.l.b16 %v299
    %v354 = vunpack.c.h.b16 %v299
    %v355 = vunpack.c.l.b16 %v300
    %v356 = vunpack.c.h.b16 %v300
    %v357 = vunpack.c.l.b16 %v301
    %v358 = vunpack.c.h.b16 %v301
    %v359 = vunpack.c.l.b16 %v302
    %v360 = vunpack.c.h.b16 %v302
    %v361 = vunpack.c.l.b16 %v303
    %v362 = vunpack.c.h.b16 %v303
    %v363 = vunpack.c.l.b16 %v304
    %v364 = vunpack.c.h.b16 %v304
    %v365 = vpack.c.b16 %v335, %v333
    %v366 = vpack.c.b16 %v336, %v334
    %v367 = vpack.c.b16 %v339, %v337
    %v368 = vpack.c.b16 %v340, %v338
    %v369 = vpack.c.b16 %v343, %v341
    %v370 = vpack.c.b16 %v344, %v342
    %v371 = vpack.c.b16 %v347, %v345
    %v372 = vpack.c.b16 %v348, %v346
    %v373 = vpack.c.b16 %v351, %v349
    %v374 = vpack.c.b16 %v352, %v350
    %v375 = vpack.c.b16 %v355, %v353
    %v376 = vpack.c.b16 %v356, %v354
    %v377 = vpack.c.b16 %v359, %v357
    %v378 = vpack.c.b16 %v360, %v358
    %v379 = vpack.c.b16 %v363, %v361
    %v380 = vpack.c.b16 %v364, %v362
    %397 = vmatprep.subr.bf16.mxu0 %v380
    %398 = vmatpush1.bf16.msra.mxu0 %v379
    %399 = vmatprep.subr.bf16.mxu0 %v378
    %400 = vmatpush1.bf16.msra.mxu0 %v377
    %401 = vmatprep.subr.bf16.mxu0 %v376
    %402 = vmatpush1.bf16.msra.mxu0 %v375
    %403 = vmatprep.subr.bf16.mxu0 %v374
    %404 = vmatpush1.bf16.msra.mxu0 %v373
    %405 = vmatprep.subr.bf16.mxu0 %v372
    %406 = vmatpush1.bf16.msra.mxu0 %v371
    %407 = vmatprep.subr.bf16.mxu0 %v370
    %408 = vmatpush1.bf16.msra.mxu0 %v369
    %409 = vmatprep.subr.bf16.mxu0 %v368
    %410 = vmatpush1.bf16.msra.mxu0 %v367
    %411 = vmatprep.subr.bf16.mxu0 %v366
    %412 = vmatpush1.bf16.msra.mxu0 %v365
    %413 = vmatprep.subr.bf16.mxu0 0
    %414 = vmatpush2.bf16.msra.mxu0 0
    %415 = vmatprep.subr.bf16.mxu0 0
    %416 = vmatpush2.bf16.msra.mxu0 0
    %417 = vmatprep.subr.bf16.mxu0 0
    %418 = vmatpush2.bf16.msra.mxu0 0
    %419 = vmatprep.subr.bf16.mxu0 0
    %420 = vmatpush2.bf16.msra.mxu0 0
    %421 = vmatprep.subr.bf16.mxu0 0
    %422 = vmatpush2.bf16.msra.mxu0 0
    %423 = vmatprep.subr.bf16.mxu0 0
    %424 = vmatpush2.bf16.msra.mxu0 0
    %425 = vmatprep.subr.bf16.mxu0 0
    %426 = vmatpush2.bf16.msra.mxu0 0
    %427 = vmatprep.subr.bf16.mxu0 0
    %428 = vmatpush2.bf16.msra.mxu0 0
    %429 = vmatprep.mubr.bf16.mxu0 0
    %430 = vmatmul.mubr.bf16.gmra.mxu0 %v281
    %v431 = vpop.f32.mrf.mxu0
    %v432 = vadd.f32 %v310, %v431
    %v433 = vpop.f32.mrf.mxu0
    %v434 = vadd.f32 %v314, %v433
    %v435 = vpop.f32.mrf.mxu0
    %v436 = vadd.f32 %v310, %v435
    %v437 = vpop.f32.mrf.mxu0
    %v438 = vadd.f32 %v314, %v437
    %439 = vmatprep.mubr.bf16.mxu0 0
    %440 = vmatmul.mubr.bf16.gmra.mxu0 %v282
    %v441 = vpop.f32.mrf.mxu0
    %v442 = vadd.f32 %v310, %v441
    %v443 = vpop.f32.mrf.mxu0
    %v444 = vadd.f32 %v314, %v443
    %v445 = vpop.f32.mrf.mxu0
    %v446 = vadd.f32 %v310, %v445
    %v447 = vpop.f32.mrf.mxu0
    %v448 = vadd.f32 %v314, %v447
    %449 = vmatprep.mubr.bf16.mxu0 0
    %450 = vmatmul.mubr.bf16.gmra.mxu0 %v283
    %v451 = vpop.f32.mrf.mxu0
    %v452 = vadd.f32 %v310, %v451
    %v453 = vpop.f32.mrf.mxu0
    %v454 = vadd.f32 %v314, %v453
    %v455 = vpop.f32.mrf.mxu0
    %v456 = vadd.f32 %v310, %v455
    %v457 = vpop.f32.mrf.mxu0
    %v458 = vadd.f32 %v314, %v457
    %459 = vmatprep.mubr.bf16.mxu0 0
    %460 = vmatmul.mubr.bf16.gmra.mxu0 %v284
    %v461 = vpop.f32.mrf.mxu0
    %v462 = vadd.f32 %v310, %v461
    %v463 = vpop.f32.mrf.mxu0
    %v464 = vadd.f32 %v314, %v463
    %v465 = vpop.f32.mrf.mxu0
    %v466 = vadd.f32 %v310, %v465
    %v467 = vpop.f32.mrf.mxu0
    %v468 = vadd.f32 %v314, %v467
    %469 = vmatprep.mubr.bf16.mxu0 0
    %470 = vmatmul.mubr.bf16.gmra.mxu0 %v285
    %v471 = vpop.f32.mrf.mxu0
    %v472 = vadd.f32 %v310, %v471
    %v473 = vpop.f32.mrf.mxu0
    %v474 = vadd.f32 %v314, %v473
    %v475 = vpop.f32.mrf.mxu0
    %v476 = vadd.f32 %v310, %v475
    %v477 = vpop.f32.mrf.mxu0
    %v478 = vadd.f32 %v314, %v477
    %479 = vmatprep.mubr.bf16.mxu0 0
    %480 = vmatmul.mubr.bf16.gmra.mxu0 %v286
    %v481 = vpop.f32.mrf.mxu0
    %v482 = vadd.f32 %v310, %v481
    %v483 = vpop.f32.mrf.mxu0
    %v484 = vadd.f32 %v314, %v483
    %v485 = vpop.f32.mrf.mxu0
    %v486 = vadd.f32 %v310, %v485
    %v487 = vpop.f32.mrf.mxu0
    %v488 = vadd.f32 %v314, %v487
    %489 = vmatprep.mubr.bf16.mxu0 0
    %490 = vmatmul.mubr.bf16.gmra.mxu0 %v287
    %v491 = vpop.f32.mrf.mxu0
    %v492 = vadd.f32 %v310, %v491
    %v493 = vpop.f32.mrf.mxu0
    %v494 = vadd.f32 %v314, %v493
    %v495 = vpop.f32.mrf.mxu0
    %v496 = vadd.f32 %v310, %v495
    %v497 = vpop.f32.mrf.mxu0
    %v498 = vadd.f32 %v314, %v497
    %499 = vmatprep.mubr.bf16.mxu0 0
    %500 = vmatmul.mubr.bf16.gmra.mxu0 %v288
    %v501 = vpop.f32.mrf.mxu0
    %v502 = vadd.f32 %v310, %v501
    %v503 = vpop.f32.mrf.mxu0
    %v504 = vadd.f32 %v314, %v503
    %v505 = vpop.f32.mrf.mxu0
    %v506 = vadd.f32 %v310, %v505
    %v507 = vpop.f32.mrf.mxu0
    %v508 = vadd.f32 %v314, %v507
    %509 = vdwg.mxu0
    %v510 = vmax.f32 %v432, 0.0
    %v511 = vmax.f32 %v434, 0.0
    %v512 = vmax.f32 %v436, 0.0
    %v513 = vmax.f32 %v438, 0.0
    %v514 = vmax.f32 %v442, 0.0
    %v515 = vmax.f32 %v444, 0.0
    %v516 = vmax.f32 %v446, 0.0
    %v517 = vmax.f32 %v448, 0.0
    %v518 = vmax.f32 %v452, 0.0
    %v519 = vmax.f32 %v454, 0.0
    %v520 = vmax.f32 %v456, 0.0
    %v521 = vmax.f32 %v458, 0.0
    %v522 = vmax.f32 %v462, 0.0
    %v523 = vmax.f32 %v464, 0.0
    %v524 = vmax.f32 %v466, 0.0
    %v525 = vmax.f32 %v468, 0.0
    %v526 = vmax.f32 %v472, 0.0
    %v527 = vmax.f32 %v474, 0.0
    %v528 = vmax.f32 %v476, 0.0
    %v529 = vmax.f32 %v478, 0.0
    %v530 = vmax.f32 %v482, 0.0
    %v531 = vmax.f32 %v484, 0.0
    %v532 = vmax.f32 %v486, 0.0
    %v533 = vmax.f32 %v488, 0.0
    %v534 = vmax.f32 %v492, 0.0
    %v535 = vmax.f32 %v494, 0.0
    %v536 = vmax.f32 %v496, 0.0
    %v537 = vmax.f32 %v498, 0.0
    %v538 = vmax.f32 %v502, 0.0
    %v539 = vmax.f32 %v504, 0.0
    %v540 = vmax.f32 %v506, 0.0
    %v541 = vmax.f32 %v508, 0.0
    %v542 = vpack.c.bf16 %v512, %v510
    %v543 = vpack.c.bf16 %v513, %v511
    %v544 = vpack.c.bf16 %v516, %v514
    %v545 = vpack.c.bf16 %v517, %v515
    %v546 = vpack.c.bf16 %v520, %v518
    %v547 = vpack.c.bf16 %v521, %v519
    %v548 = vpack.c.bf16 %v524, %v522
    %v549 = vpack.c.bf16 %v525, %v523
    %v550 = vpack.c.bf16 %v528, %v526
    %v551 = vpack.c.bf16 %v529, %v527
    %v552 = vpack.c.bf16 %v532, %v530
    %v553 = vpack.c.bf16 %v533, %v531
    %v554 = vpack.c.bf16 %v536, %v534
    %v555 = vpack.c.bf16 %v537, %v535
    %v556 = vpack.c.bf16 %v540, %v538
    %v557 = vpack.c.bf16 %v541, %v539
    %v558 = vld [vmem:[%s6] sm:$0xff]
    %v559 = vld [vmem:[%s6 + $0x8] sm:$0xff]
    %v560 = vld [vmem:[%s6 + $0x10] sm:$0xff]
    %v561 = vld [vmem:[%s6 + $0x18] sm:$0xff]
    %v562 = vld [vmem:[%s6 + $0x20] sm:$0xff]
    %v563 = vld [vmem:[%s6 + $0x28] sm:$0xff]
    %v564 = vld [vmem:[%s6 + $0x30] sm:$0xff]
    %v565 = vld [vmem:[%s6 + $0x38] sm:$0xff]
    %v566 = vld [vmem:[%s6 + $0x40] sm:$0xff]
    %v567 = vld [vmem:[%s6 + $0x48] sm:$0xff]
    %v568 = vld [vmem:[%s6 + $0x50] sm:$0xff]
    %v569 = vld [vmem:[%s6 + $0x58] sm:$0xff]
    %v570 = vld [vmem:[%s6 + $0x60] sm:$0xff]
    %v571 = vld [vmem:[%s6 + $0x68] sm:$0xff]
    %v572 = vld [vmem:[%s6 + $0x70] sm:$0xff]
    %v573 = vld [vmem:[%s6 + $0x78] sm:$0xff]
    %v574 = vld [vmem:[%s6 + $0x80] sm:$0xff]
    %v575 = vld [vmem:[%s6 + $0x88] sm:$0xff]
    %v576 = vld [vmem:[%s6 + $0x90] sm:$0xff]
    %v577 = vld [vmem:[%s6 + $0x98] sm:$0xff]
    %v578 = vld [vmem:[%s6 + $0xa0] sm:$0xff]
    %v579 = vld [vmem:[%s6 + $0xa8] sm:$0xff]
    %v580 = vld [vmem:[%s6 + $0xb0] sm:$0xff]
    %v581 = vld [vmem:[%s6 + $0xb8] sm:$0xff]
    %v582 = vld [vmem:[%s6 + $0xc0] sm:$0xff]
    %v583 = vld [vmem:[%s6 + $0xc8] sm:$0xff]
    %v584 = vld [vmem:[%s6 + $0xd0] sm:$0xff]
    %v585 = vld [vmem:[%s6 + $0xd8] sm:$0xff]
    %v586 = vld [vmem:[%s6 + $0xe0] sm:$0xff]
    %v587 = vld [vmem:[%s6 + $0xe8] sm:$0xff]
    %v588 = vld [vmem:[%s6 + $0xf0] sm:$0xff]
    %v589 = vld [vmem:[%s6 + $0xf8] sm:$0xff]
    %v590 = vld [vmem:[%s7] sm:$0x3]
    %v592 = vlaneseq
    %v593 = vshrl.u32 %v592, 7
    %v594 = vsub.s32 0, %v593
    %v595 = vrot.slane %v590, %v594
    %v596 = vlaneseq
    %v597 = vshrl.u32 %v596, 7
    %v598 = vsub.s32 1, %v597
    %v599 = vrot.slane %v590, %v598
    %v634 = vunpack.c.l.b16 %v558
    %v635 = vunpack.c.h.b16 %v558
    %v636 = vunpack.c.l.b16 %v559
    %v637 = vunpack.c.h.b16 %v559
    %v638 = vunpack.c.l.b16 %v560
    %v639 = vunpack.c.h.b16 %v560
    %v640 = vunpack.c.l.b16 %v561
    %v641 = vunpack.c.h.b16 %v561
    %v642 = vunpack.c.l.b16 %v562
    %v643 = vunpack.c.h.b16 %v562
    %v644 = vunpack.c.l.b16 %v563
    %v645 = vunpack.c.h.b16 %v563
    %v646 = vunpack.c.l.b16 %v564
    %v647 = vunpack.c.h.b16 %v564
    %v648 = vunpack.c.l.b16 %v565
    %v649 = vunpack.c.h.b16 %v565
    %v650 = vunpack.c.l.b16 %v566
    %v651 = vunpack.c.h.b16 %v566
    %v652 = vunpack.c.l.b16 %v567
    %v653 = vunpack.c.h.b16 %v567
    %v654 = vunpack.c.l.b16 %v568
    %v655 = vunpack.c.h.b16 %v568
    %v656 = vunpack.c.l.b16 %v569
    %v657 = vunpack.c.h.b16 %v569
    %v658 = vunpack.c.l.b16 %v570
    %v659 = vunpack.c.h.b16 %v570
    %v660 = vunpack.c.l.b16 %v571
    %v661 = vunpack.c.h.b16 %v571
    %v662 = vunpack.c.l.b16 %v572
    %v663 = vunpack.c.h.b16 %v572
    %v664 = vunpack.c.l.b16 %v573
    %v665 = vunpack.c.h.b16 %v573
    %v666 = vunpack.c.l.b16 %v574
    %v667 = vunpack.c.h.b16 %v574
    %v668 = vunpack.c.l.b16 %v575
    %v669 = vunpack.c.h.b16 %v575
    %v670 = vunpack.c.l.b16 %v576
    %v671 = vunpack.c.h.b16 %v576
    %v672 = vunpack.c.l.b16 %v577
    %v673 = vunpack.c.h.b16 %v577
    %v674 = vunpack.c.l.b16 %v578
    %v675 = vunpack.c.h.b16 %v578
    %v676 = vunpack.c.l.b16 %v579
    %v677 = vunpack.c.h.b16 %v579
    %v678 = vunpack.c.l.b16 %v580
    %v679 = vunpack.c.h.b16 %v580
    %v680 = vunpack.c.l.b16 %v581
    %v681 = vunpack.c.h.b16 %v581
    %v682 = vunpack.c.l.b16 %v582
    %v683 = vunpack.c.h.b16 %v582
    %v684 = vunpack.c.l.b16 %v583
    %v685 = vunpack.c.h.b16 %v583
    %v686 = vunpack.c.l.b16 %v584
    %v687 = vunpack.c.h.b16 %v584
    %v688 = vunpack.c.l.b16 %v585
    %v689 = vunpack.c.h.b16 %v585
    %v690 = vunpack.c.l.b16 %v586
    %v691 = vunpack.c.h.b16 %v586
    %v692 = vunpack.c.l.b16 %v587
    %v693 = vunpack.c.h.b16 %v587
    %v694 = vunpack.c.l.b16 %v588
    %v695 = vunpack.c.h.b16 %v588
    %v696 = vunpack.c.l.b16 %v589
    %v697 = vunpack.c.h.b16 %v589
    %v698 = vpack.c.b16 %v636, %v634
    %v699 = vpack.c.b16 %v637, %v635
    %v700 = vpack.c.b16 %v640, %v638
    %v701 = vpack.c.b16 %v641, %v639
    %v702 = vpack.c.b16 %v644, %v642
    %v703 = vpack.c.b16 %v645, %v643
    %v704 = vpack.c.b16 %v648, %v646
    %v705 = vpack.c.b16 %v649, %v647
    %v706 = vpack.c.b16 %v652, %v650
    %v707 = vpack.c.b16 %v653, %v651
    %v708 = vpack.c.b16 %v656, %v654
    %v709 = vpack.c.b16 %v657, %v655
    %v710 = vpack.c.b16 %v660, %v658
    %v711 = vpack.c.b16 %v661, %v659
    %v712 = vpack.c.b16 %v664, %v662
    %v713 = vpack.c.b16 %v665, %v663
    %v714 = vpack.c.b16 %v668, %v666
    %v715 = vpack.c.b16 %v669, %v667
    %v716 = vpack.c.b16 %v672, %v670
    %v717 = vpack.c.b16 %v673, %v671
    %v718 = vpack.c.b16 %v676, %v674
    %v719 = vpack.c.b16 %v677, %v675
    %v720 = vpack.c.b16 %v680, %v678
    %v721 = vpack.c.b16 %v681, %v679
    %v722 = vpack.c.b16 %v684, %v682
    %v723 = vpack.c.b16 %v685, %v683
    %v724 = vpack.c.b16 %v688, %v686
    %v725 = vpack.c.b16 %v689, %v687
    %v726 = vpack.c.b16 %v692, %v690
    %v727 = vpack.c.b16 %v693, %v691
    %v728 = vpack.c.b16 %v696, %v694
    %v729 = vpack.c.b16 %v697, %v695
    %762 = vmatprep.subr.bf16.mxu0 %v713
    %763 = vmatpush1.bf16.msra.mxu0 %v712
    %764 = vmatprep.subr.bf16.mxu0 %v711
    %765 = vmatpush1.bf16.msra.mxu0 %v710
    %766 = vmatprep.subr.bf16.mxu0 %v709
    %767 = vmatpush1.bf16.msra.mxu0 %v708
    %768 = vmatprep.subr.bf16.mxu0 %v707
    %769 = vmatpush1.bf16.msra.mxu0 %v706
    %770 = vmatprep.subr.bf16.mxu0 %v705
    %771 = vmatpush1.bf16.msra.mxu0 %v704
    %772 = vmatprep.subr.bf16.mxu0 %v703
    %773 = vmatpush1.bf16.msra.mxu0 %v702
    %774 = vmatprep.subr.bf16.mxu0 %v701
    %775 = vmatpush1.bf16.msra.mxu0 %v700
    %776 = vmatprep.subr.bf16.mxu0 %v699
    %777 = vmatpush1.bf16.msra.mxu0 %v698
    %778 = vmatprep.subr.bf16.mxu0 %v729
    %779 = vmatpush2.bf16.msra.mxu0 %v728
    %780 = vmatprep.subr.bf16.mxu0 %v727
    %781 = vmatpush2.bf16.msra.mxu0 %v726
    %782 = vmatprep.subr.bf16.mxu0 %v725
    %783 = vmatpush2.bf16.msra.mxu0 %v724
    %784 = vmatprep.subr.bf16.mxu0 %v723
    %785 = vmatpush2.bf16.msra.mxu0 %v722
    %786 = vmatprep.subr.bf16.mxu0 %v721
    %787 = vmatpush2.bf16.msra.mxu0 %v720
    %788 = vmatprep.subr.bf16.mxu0 %v719
    %789 = vmatpush2.bf16.msra.mxu0 %v718
    %790 = vmatprep.subr.bf16.mxu0 %v717
    %791 = vmatpush2.bf16.msra.mxu0 %v716
    %792 = vmatprep.subr.bf16.mxu0 %v715
    %793 = vmatpush2.bf16.msra.mxu0 %v714
    %794 = vmatprep.mubr.bf16.mxu0 %v543
    %795 = vmatmul.mubr.bf16.gmra.mxu0 %v542
    %v796 = vpop.f32.mrf.mxu0
    %v797 = vadd.f32 %v595, %v796
    %v798 = vpop.f32.mrf.mxu0
    %v799 = vadd.f32 %v599, %v798
    %v800 = vpop.f32.mrf.mxu0
    %v801 = vadd.f32 %v595, %v800
    %v802 = vpop.f32.mrf.mxu0
    %v803 = vadd.f32 %v599, %v802
    %804 = vmatprep.mubr.bf16.mxu0 %v545
    %805 = vmatmul.mubr.bf16.gmra.mxu0 %v544
    %v806 = vpop.f32.mrf.mxu0
    %v807 = vadd.f32 %v595, %v806
    %v808 = vpop.f32.mrf.mxu0
    %v809 = vadd.f32 %v599, %v808
    %v810 = vpop.f32.mrf.mxu0
    %v811 = vadd.f32 %v595, %v810
    %v812 = vpop.f32.mrf.mxu0
    %v813 = vadd.f32 %v599, %v812
    %814 = vmatprep.mubr.bf16.mxu0 %v547
    %815 = vmatmul.mubr.bf16.gmra.mxu0 %v546
    %v816 = vpop.f32.mrf.mxu0
    %v817 = vadd.f32 %v595, %v816
    %v818 = vpop.f32.mrf.mxu0
    %v819 = vadd.f32 %v599, %v818
    %v820 = vpop.f32.mrf.mxu0
    %v821 = vadd.f32 %v595, %v820
    %v822 = vpop.f32.mrf.mxu0
    %v823 = vadd.f32 %v599, %v822
    %824 = vmatprep.mubr.bf16.mxu0 %v549
    %825 = vmatmul.mubr.bf16.gmra.mxu0 %v548
    %v826 = vpop.f32.mrf.mxu0
    %v827 = vadd.f32 %v595, %v826
    %v828 = vpop.f32.mrf.mxu0
    %v829 = vadd.f32 %v599, %v828
    %v830 = vpop.f32.mrf.mxu0
    %v831 = vadd.f32 %v595, %v830
    %v832 = vpop.f32.mrf.mxu0
    %v833 = vadd.f32 %v599, %v832
    %834 = vmatprep.mubr.bf16.mxu0 %v551
    %835 = vmatmul.mubr.bf16.gmra.mxu0 %v550
    %v836 = vpop.f32.mrf.mxu0
    %v837 = vadd.f32 %v595, %v836
    %v838 = vpop.f32.mrf.mxu0
    %v839 = vadd.f32 %v599, %v838
    %v840 = vpop.f32.mrf.mxu0
    %v841 = vadd.f32 %v595, %v840
    %v842 = vpop.f32.mrf.mxu0
    %v843 = vadd.f32 %v599, %v842
    %844 = vmatprep.mubr.bf16.mxu0 %v553
    %845 = vmatmul.mubr.bf16.gmra.mxu0 %v552
    %v846 = vpop.f32.mrf.mxu0
    %v847 = vadd.f32 %v595, %v846
    %v848 = vpop.f32.mrf.mxu0
    %v849 = vadd.f32 %v599, %v848
    %v850 = vpop.f32.mrf.mxu0
    %v851 = vadd.f32 %v595, %v850
    %v852 = vpop.f32.mrf.mxu0
    %v853 = vadd.f32 %v599, %v852
    %854 = vmatprep.mubr.bf16.mxu0 %v555
    %855 = vmatmul.mubr.bf16.gmra.mxu0 %v554
    %v856 = vpop.f32.mrf.mxu0
    %v857 = vadd.f32 %v595, %v856
    %v858 = vpop.f32.mrf.mxu0
    %v859 = vadd.f32 %v599, %v858
    %v860 = vpop.f32.mrf.mxu0
    %v861 = vadd.f32 %v595, %v860
    %v862 = vpop.f32.mrf.mxu0
    %v863 = vadd.f32 %v599, %v862
    %864 = vmatprep.mubr.bf16.mxu0 %v557
    %865 = vmatmul.mubr.bf16.gmra.mxu0 %v556
    %v866 = vpop.f32.mrf.mxu0
    %v867 = vadd.f32 %v595, %v866
    %v868 = vpop.f32.mrf.mxu0
    %v869 = vadd.f32 %v599, %v868
    %v870 = vpop.f32.mrf.mxu0
    %v871 = vadd.f32 %v595, %v870
    %v872 = vpop.f32.mrf.mxu0
    %v873 = vadd.f32 %v599, %v872
    %874 = vdwg.mxu0
    %v875 = vmax.f32 %v797, 0.0
    %v876 = vmax.f32 %v799, 0.0
    %v877 = vmax.f32 %v801, 0.0
    %v878 = vmax.f32 %v803, 0.0
    %v879 = vmax.f32 %v807, 0.0
    %v880 = vmax.f32 %v809, 0.0
    %v881 = vmax.f32 %v811, 0.0
    %v882 = vmax.f32 %v813, 0.0
    %v883 = vmax.f32 %v817, 0.0
    %v884 = vmax.f32 %v819, 0.0
    %v885 = vmax.f32 %v821, 0.0
    %v886 = vmax.f32 %v823, 0.0
    %v887 = vmax.f32 %v827, 0.0
    %v888 = vmax.f32 %v829, 0.0
    %v889 = vmax.f32 %v831, 0.0
    %v890 = vmax.f32 %v833, 0.0
    %v891 = vmax.f32 %v837, 0.0
    %v892 = vmax.f32 %v839, 0.0
    %v893 = vmax.f32 %v841, 0.0
    %v894 = vmax.f32 %v843, 0.0
    %v895 = vmax.f32 %v847, 0.0
    %v896 = vmax.f32 %v849, 0.0
    %v897 = vmax.f32 %v851, 0.0
    %v898 = vmax.f32 %v853, 0.0
    %v899 = vmax.f32 %v857, 0.0
    %v900 = vmax.f32 %v859, 0.0
    %v901 = vmax.f32 %v861, 0.0
    %v902 = vmax.f32 %v863, 0.0
    %v903 = vmax.f32 %v867, 0.0
    %v904 = vmax.f32 %v869, 0.0
    %v905 = vmax.f32 %v871, 0.0
    %v906 = vmax.f32 %v873, 0.0
    %v907 = vpack.c.bf16 %v877, %v875
    %v908 = vpack.c.bf16 %v878, %v876
    %v909 = vpack.c.bf16 %v881, %v879
    %v910 = vpack.c.bf16 %v882, %v880
    %v911 = vpack.c.bf16 %v885, %v883
    %v912 = vpack.c.bf16 %v886, %v884
    %v913 = vpack.c.bf16 %v889, %v887
    %v914 = vpack.c.bf16 %v890, %v888
    %v915 = vpack.c.bf16 %v893, %v891
    %v916 = vpack.c.bf16 %v894, %v892
    %v917 = vpack.c.bf16 %v897, %v895
    %v918 = vpack.c.bf16 %v898, %v896
    %v919 = vpack.c.bf16 %v901, %v899
    %v920 = vpack.c.bf16 %v902, %v900
    %v921 = vpack.c.bf16 %v905, %v903
    %v922 = vpack.c.bf16 %v906, %v904
    %v923 = vld [vmem:[%s10] sm:$0xff]
    %v924 = vld [vmem:[%s10 + $0x8] sm:$0xff]
    %v925 = vld [vmem:[%s10 + $0x10] sm:$0xff]
    %v926 = vld [vmem:[%s10 + $0x18] sm:$0xff]
    %v927 = vld [vmem:[%s10 + $0x20] sm:$0xff]
    %v928 = vld [vmem:[%s10 + $0x28] sm:$0xff]
    %v929 = vld [vmem:[%s10 + $0x30] sm:$0xff]
    %v930 = vld [vmem:[%s10 + $0x38] sm:$0xff]
    %v931 = vld [vmem:[%s10 + $0x40] sm:$0xff]
    %v932 = vld [vmem:[%s10 + $0x48] sm:$0xff]
    %v933 = vld [vmem:[%s10 + $0x50] sm:$0xff]
    %v934 = vld [vmem:[%s10 + $0x58] sm:$0xff]
    %v935 = vld [vmem:[%s10 + $0x60] sm:$0xff]
    %v936 = vld [vmem:[%s10 + $0x68] sm:$0xff]
    %v937 = vld [vmem:[%s10 + $0x70] sm:$0xff]
    %v938 = vld [vmem:[%s10 + $0x78] sm:$0xff]
    %v939 = vld [vmem:[%s10 + $0x80] sm:$0xff]
    %v940 = vld [vmem:[%s10 + $0x88] sm:$0xff]
    %v941 = vld [vmem:[%s10 + $0x90] sm:$0xff]
    %v942 = vld [vmem:[%s10 + $0x98] sm:$0xff]
    %v943 = vld [vmem:[%s10 + $0xa0] sm:$0xff]
    %v944 = vld [vmem:[%s10 + $0xa8] sm:$0xff]
    %v945 = vld [vmem:[%s10 + $0xb0] sm:$0xff]
    %v946 = vld [vmem:[%s10 + $0xb8] sm:$0xff]
    %v947 = vld [vmem:[%s10 + $0xc0] sm:$0xff]
    %v948 = vld [vmem:[%s10 + $0xc8] sm:$0xff]
    %v949 = vld [vmem:[%s10 + $0xd0] sm:$0xff]
    %v950 = vld [vmem:[%s10 + $0xd8] sm:$0xff]
    %v951 = vld [vmem:[%s10 + $0xe0] sm:$0xff]
    %v952 = vld [vmem:[%s10 + $0xe8] sm:$0xff]
    %v953 = vld [vmem:[%s10 + $0xf0] sm:$0xff]
    %v954 = vld [vmem:[%s10 + $0xf8] sm:$0xff]
    %v955 = vld [vmem:[%s0] sm:$0xff]
    %v956 = vld [vmem:[%s0 + $0x8] sm:$0xff]
    %v957 = vld [vmem:[%s0 + $0x10] sm:$0xff]
    %v958 = vld [vmem:[%s0 + $0x18] sm:$0xff]
    %v959 = vld [vmem:[%s0 + $0x20] sm:$0xff]
    %v960 = vld [vmem:[%s0 + $0x28] sm:$0xff]
    %v961 = vld [vmem:[%s0 + $0x30] sm:$0xff]
    %v962 = vld [vmem:[%s0 + $0x38] sm:$0xff]
    %v963 = vld [vmem:[%s0 + $0x40] sm:$0xff]
    %v964 = vld [vmem:[%s0 + $0x48] sm:$0xff]
    %v965 = vld [vmem:[%s0 + $0x50] sm:$0xff]
    %v966 = vld [vmem:[%s0 + $0x58] sm:$0xff]
    %v967 = vld [vmem:[%s0 + $0x60] sm:$0xff]
    %v968 = vld [vmem:[%s0 + $0x68] sm:$0xff]
    %v969 = vld [vmem:[%s0 + $0x70] sm:$0xff]
    %v970 = vld [vmem:[%s0 + $0x78] sm:$0xff]
    %v971 = vld [vmem:[%s9] sm:$0x3]
    %v972 = vld [vmem:[%s8] ss:$4 sm:$0x3]
    %974 = vset.pattern.permute.xlu0 0
    %975 = vperm.xlu0 %974, %v955
    %v976 = vpop.permute.xlu0 %975
    %979 = vset.pattern.permute.xlu0 0
    %980 = vperm.xlu0 %979, %v956
    %v981 = vpop.permute.xlu0 %980
    %984 = vset.pattern.permute.xlu0 0
    %985 = vperm.xlu0 %984, %v957
    %v986 = vpop.permute.xlu0 %985
    %989 = vset.pattern.permute.xlu0 0
    %990 = vperm.xlu0 %989, %v958
    %v991 = vpop.permute.xlu0 %990
    %994 = vset.pattern.permute.xlu0 0
    %995 = vperm.xlu0 %994, %v959
    %v996 = vpop.permute.xlu0 %995
    %999 = vset.pattern.permute.xlu0 0
    %1000 = vperm.xlu0 %999, %v960
    %v1001 = vpop.permute.xlu0 %1000
    %1004 = vset.pattern.permute.xlu0 0
    %1005 = vperm.xlu0 %1004, %v961
    %v1006 = vpop.permute.xlu0 %1005
    %1009 = vset.pattern.permute.xlu0 0
    %1010 = vperm.xlu0 %1009, %v962
    %v1011 = vpop.permute.xlu0 %1010
    %1014 = vset.pattern.permute.xlu0 0
    %1015 = vperm.xlu0 %1014, %v963
    %v1016 = vpop.permute.xlu0 %1015
    %1019 = vset.pattern.permute.xlu0 0
    %1020 = vperm.xlu0 %1019, %v964
    %v1021 = vpop.permute.xlu0 %1020
    %1024 = vset.pattern.permute.xlu0 0
    %1025 = vperm.xlu0 %1024, %v965
    %v1026 = vpop.permute.xlu0 %1025
    %1029 = vset.pattern.permute.xlu0 0
    %1030 = vperm.xlu0 %1029, %v966
    %v1031 = vpop.permute.xlu0 %1030
    %1034 = vset.pattern.permute.xlu0 0
    %1035 = vperm.xlu0 %1034, %v967
    %v1036 = vpop.permute.xlu0 %1035
    %1039 = vset.pattern.permute.xlu0 0
    %1040 = vperm.xlu0 %1039, %v968
    %v1041 = vpop.permute.xlu0 %1040
    %1044 = vset.pattern.permute.xlu0 0
    %1045 = vperm.xlu0 %1044, %v969
    %v1046 = vpop.permute.xlu0 %1045
    %1049 = vset.pattern.permute.xlu0 0
    %1050 = vperm.xlu0 %1049, %v970
    %v1051 = vpop.permute.xlu0 %1050
    %v1054 = vlaneseq
    %v1055 = vshrl.u32 %v1054, 7
    %v1056 = vsub.s32 0, %v1055
    %v1057 = vrot.slane %v972, %v1056
    %v1058 = vlaneseq
    %v1059 = vshrl.u32 %v1058, 7
    %v1060 = vsub.s32 1, %v1059
    %v1061 = vrot.slane %v972, %v1060
    %v1064 = vmul.f32 %v976, %v1057
    %v1065 = vmul.f32 %v976, %v1061
    %v1066 = vmul.f32 %v981, %v1057
    %v1067 = vmul.f32 %v981, %v1061
    %v1068 = vmul.f32 %v986, %v1057
    %v1069 = vmul.f32 %v986, %v1061
    %v1070 = vmul.f32 %v991, %v1057
    %v1071 = vmul.f32 %v991, %v1061
    %v1072 = vmul.f32 %v996, %v1057
    %v1073 = vmul.f32 %v996, %v1061
    %v1074 = vmul.f32 %v1001, %v1057
    %v1075 = vmul.f32 %v1001, %v1061
    %v1076 = vmul.f32 %v1006, %v1057
    %v1077 = vmul.f32 %v1006, %v1061
    %v1078 = vmul.f32 %v1011, %v1057
    %v1079 = vmul.f32 %v1011, %v1061
    %v1080 = vmul.f32 %v1016, %v1057
    %v1081 = vmul.f32 %v1016, %v1061
    %v1082 = vmul.f32 %v1021, %v1057
    %v1083 = vmul.f32 %v1021, %v1061
    %v1084 = vmul.f32 %v1026, %v1057
    %v1085 = vmul.f32 %v1026, %v1061
    %v1086 = vmul.f32 %v1031, %v1057
    %v1087 = vmul.f32 %v1031, %v1061
    %v1088 = vmul.f32 %v1036, %v1057
    %v1089 = vmul.f32 %v1036, %v1061
    %v1090 = vmul.f32 %v1041, %v1057
    %v1091 = vmul.f32 %v1041, %v1061
    %v1092 = vmul.f32 %v1046, %v1057
    %v1093 = vmul.f32 %v1046, %v1061
    %v1094 = vmul.f32 %v1051, %v1057
    %v1095 = vmul.f32 %v1051, %v1061
    %v1097 = vlaneseq
    %v1098 = vshrl.u32 %v1097, 7
    %v1099 = vsub.s32 0, %v1098
    %v1100 = vrot.slane %v971, %v1099
    %v1101 = vlaneseq
    %v1102 = vshrl.u32 %v1101, 7
    %v1103 = vsub.s32 1, %v1102
    %v1104 = vrot.slane %v971, %v1103
    %v1107 = vadd.f32 %v1100, %v1064
    %v1108 = vadd.f32 %v1104, %v1065
    %v1109 = vadd.f32 %v1100, %v1066
    %v1110 = vadd.f32 %v1104, %v1067
    %v1111 = vadd.f32 %v1100, %v1068
    %v1112 = vadd.f32 %v1104, %v1069
    %v1113 = vadd.f32 %v1100, %v1070
    %v1114 = vadd.f32 %v1104, %v1071
    %v1115 = vadd.f32 %v1100, %v1072
    %v1116 = vadd.f32 %v1104, %v1073
    %v1117 = vadd.f32 %v1100, %v1074
    %v1118 = vadd.f32 %v1104, %v1075
    %v1119 = vadd.f32 %v1100, %v1076
    %v1120 = vadd.f32 %v1104, %v1077
    %v1121 = vadd.f32 %v1100, %v1078
    %v1122 = vadd.f32 %v1104, %v1079
    %v1123 = vadd.f32 %v1100, %v1080
    %v1124 = vadd.f32 %v1104, %v1081
    %v1125 = vadd.f32 %v1100, %v1082
    %v1126 = vadd.f32 %v1104, %v1083
    %v1127 = vadd.f32 %v1100, %v1084
    %v1128 = vadd.f32 %v1104, %v1085
    %v1129 = vadd.f32 %v1100, %v1086
    %v1130 = vadd.f32 %v1104, %v1087
    %v1131 = vadd.f32 %v1100, %v1088
    %v1132 = vadd.f32 %v1104, %v1089
    %v1133 = vadd.f32 %v1100, %v1090
    %v1134 = vadd.f32 %v1104, %v1091
    %v1135 = vadd.f32 %v1100, %v1092
    %v1136 = vadd.f32 %v1104, %v1093
    %v1137 = vadd.f32 %v1100, %v1094
    %v1138 = vadd.f32 %v1104, %v1095
    %s1139 = scalar_lea.vmem %s8, 1
    %v1140 = vld [vmem:[%s1139] ss:$4 sm:$0x3]
    %1141 = vset.pattern.permute.xlu0 1
    %1142 = vperm.xlu0 %1141, %v955
    %v1143 = vpop.permute.xlu0 %1142
    %1145 = vset.pattern.permute.xlu0 1
    %1146 = vperm.xlu0 %1145, %v956
    %v1147 = vpop.permute.xlu0 %1146
    %1149 = vset.pattern.permute.xlu0 1
    %1150 = vperm.xlu0 %1149, %v957
    %v1151 = vpop.permute.xlu0 %1150
    %1153 = vset.pattern.permute.xlu0 1
    %1154 = vperm.xlu0 %1153, %v958
    %v1155 = vpop.permute.xlu0 %1154
    %1157 = vset.pattern.permute.xlu0 1
    %1158 = vperm.xlu0 %1157, %v959
    %v1159 = vpop.permute.xlu0 %1158
    %1161 = vset.pattern.permute.xlu0 1
    %1162 = vperm.xlu0 %1161, %v960
    %v1163 = vpop.permute.xlu0 %1162
    %1165 = vset.pattern.permute.xlu0 1
    %1166 = vperm.xlu0 %1165, %v961
    %v1167 = vpop.permute.xlu0 %1166
    %1169 = vset.pattern.permute.xlu0 1
    %1170 = vperm.xlu0 %1169, %v962
    %v1171 = vpop.permute.xlu0 %1170
    %1173 = vset.pattern.permute.xlu0 1
    %1174 = vperm.xlu0 %1173, %v963
    %v1175 = vpop.permute.xlu0 %1174
    %1177 = vset.pattern.permute.xlu0 1
    %1178 = vperm.xlu0 %1177, %v964
    %v1179 = vpop.permute.xlu0 %1178
    %1181 = vset.pattern.permute.xlu0 1
    %1182 = vperm.xlu0 %1181, %v965
    %v1183 = vpop.permute.xlu0 %1182
    %1185 = vset.pattern.permute.xlu0 1
    %1186 = vperm.xlu0 %1185, %v966
    %v1187 = vpop.permute.xlu0 %1186
    %1189 = vset.pattern.permute.xlu0 1
    %1190 = vperm.xlu0 %1189, %v967
    %v1191 = vpop.permute.xlu0 %1190
    %1193 = vset.pattern.permute.xlu0 1
    %1194 = vperm.xlu0 %1193, %v968
    %v1195 = vpop.permute.xlu0 %1194
    %1197 = vset.pattern.permute.xlu0 1
    %1198 = vperm.xlu0 %1197, %v969
    %v1199 = vpop.permute.xlu0 %1198
    %1201 = vset.pattern.permute.xlu0 1
    %1202 = vperm.xlu0 %1201, %v970
    %v1203 = vpop.permute.xlu0 %1202
    %v1206 = vlaneseq
    %v1207 = vshrl.u32 %v1206, 7
    %v1208 = vsub.s32 0, %v1207
    %v1209 = vrot.slane %v1140, %v1208
    %v1210 = vlaneseq
    %v1211 = vshrl.u32 %v1210, 7
    %v1212 = vsub.s32 1, %v1211
    %v1213 = vrot.slane %v1140, %v1212
    %v1216 = vmul.f32 %v1143, %v1209
    %v1217 = vmul.f32 %v1143, %v1213
    %v1218 = vmul.f32 %v1147, %v1209
    %v1219 = vmul.f32 %v1147, %v1213
    %v1220 = vmul.f32 %v1151, %v1209
    %v1221 = vmul.f32 %v1151, %v1213
    %v1222 = vmul.f32 %v1155, %v1209
    %v1223 = vmul.f32 %v1155, %v1213
    %v1224 = vmul.f32 %v1159, %v1209
    %v1225 = vmul.f32 %v1159, %v1213
    %v1226 = vmul.f32 %v1163, %v1209
    %v1227 = vmul.f32 %v1163, %v1213
    %v1228 = vmul.f32 %v1167, %v1209
    %v1229 = vmul.f32 %v1167, %v1213
    %v1230 = vmul.f32 %v1171, %v1209
    %v1231 = vmul.f32 %v1171, %v1213
    %v1232 = vmul.f32 %v1175, %v1209
    %v1233 = vmul.f32 %v1175, %v1213
    %v1234 = vmul.f32 %v1179, %v1209
    %v1235 = vmul.f32 %v1179, %v1213
    %v1236 = vmul.f32 %v1183, %v1209
    %v1237 = vmul.f32 %v1183, %v1213
    %v1238 = vmul.f32 %v1187, %v1209
    %v1239 = vmul.f32 %v1187, %v1213
    %v1240 = vmul.f32 %v1191, %v1209
    %v1241 = vmul.f32 %v1191, %v1213
    %v1242 = vmul.f32 %v1195, %v1209
    %v1243 = vmul.f32 %v1195, %v1213
    %v1244 = vmul.f32 %v1199, %v1209
    %v1245 = vmul.f32 %v1199, %v1213
    %v1246 = vmul.f32 %v1203, %v1209
    %v1247 = vmul.f32 %v1203, %v1213
    %v1248 = vadd.f32 %v1107, %v1216
    %v1249 = vadd.f32 %v1108, %v1217
    %v1250 = vadd.f32 %v1109, %v1218
    %v1251 = vadd.f32 %v1110, %v1219
    %v1252 = vadd.f32 %v1111, %v1220
    %v1253 = vadd.f32 %v1112, %v1221
    %v1254 = vadd.f32 %v1113, %v1222
    %v1255 = vadd.f32 %v1114, %v1223
    %v1256 = vadd.f32 %v1115, %v1224
    %v1257 = vadd.f32 %v1116, %v1225
    %v1258 = vadd.f32 %v1117, %v1226
    %v1259 = vadd.f32 %v1118, %v1227
    %v1260 = vadd.f32 %v1119, %v1228
    %v1261 = vadd.f32 %v1120, %v1229
    %v1262 = vadd.f32 %v1121, %v1230
    %v1263 = vadd.f32 %v1122, %v1231
    %v1264 = vadd.f32 %v1123, %v1232
    %v1265 = vadd.f32 %v1124, %v1233
    %v1266 = vadd.f32 %v1125, %v1234
    %v1267 = vadd.f32 %v1126, %v1235
    %v1268 = vadd.f32 %v1127, %v1236
    %v1269 = vadd.f32 %v1128, %v1237
    %v1270 = vadd.f32 %v1129, %v1238
    %v1271 = vadd.f32 %v1130, %v1239
    %v1272 = vadd.f32 %v1131, %v1240
    %v1273 = vadd.f32 %v1132, %v1241
    %v1274 = vadd.f32 %v1133, %v1242
    %v1275 = vadd.f32 %v1134, %v1243
    %v1276 = vadd.f32 %v1135, %v1244
    %v1277 = vadd.f32 %v1136, %v1245
    %v1278 = vadd.f32 %v1137, %v1246
    %v1279 = vadd.f32 %v1138, %v1247
    %s1280 = scalar_lea.vmem %s8, 2
    %v1281 = vld [vmem:[%s1280] ss:$4 sm:$0x3]
    %1282 = vset.pattern.permute.xlu0 2
    %1283 = vperm.xlu0 %1282, %v955
    %v1284 = vpop.permute.xlu0 %1283
    %1286 = vset.pattern.permute.xlu0 2
    %1287 = vperm.xlu0 %1286, %v956
    %v1288 = vpop.permute.xlu0 %1287
    %1290 = vset.pattern.permute.xlu0 2
    %1291 = vperm.xlu0 %1290, %v957
    %v1292 = vpop.permute.xlu0 %1291
    %1294 = vset.pattern.permute.xlu0 2
    %1295 = vperm.xlu0 %1294, %v958
    %v1296 = vpop.permute.xlu0 %1295
    %1298 = vset.pattern.permute.xlu0 2
    %1299 = vperm.xlu0 %1298, %v959
    %v1300 = vpop.permute.xlu0 %1299
    %1302 = vset.pattern.permute.xlu0 2
    %1303 = vperm.xlu0 %1302, %v960
    %v1304 = vpop.permute.xlu0 %1303
    %1306 = vset.pattern.permute.xlu0 2
    %1307 = vperm.xlu0 %1306, %v961
    %v1308 = vpop.permute.xlu0 %1307
    %1310 = vset.pattern.permute.xlu0 2
    %1311 = vperm.xlu0 %1310, %v962
    %v1312 = vpop.permute.xlu0 %1311
    %1314 = vset.pattern.permute.xlu0 2
    %1315 = vperm.xlu0 %1314, %v963
    %v1316 = vpop.permute.xlu0 %1315
    %1318 = vset.pattern.permute.xlu0 2
    %1319 = vperm.xlu0 %1318, %v964
    %v1320 = vpop.permute.xlu0 %1319
    %1322 = vset.pattern.permute.xlu0 2
    %1323 = vperm.xlu0 %1322, %v965
    %v1324 = vpop.permute.xlu0 %1323
    %1326 = vset.pattern.permute.xlu0 2
    %1327 = vperm.xlu0 %1326, %v966
    %v1328 = vpop.permute.xlu0 %1327
    %1330 = vset.pattern.permute.xlu0 2
    %1331 = vperm.xlu0 %1330, %v967
    %v1332 = vpop.permute.xlu0 %1331
    %1334 = vset.pattern.permute.xlu0 2
    %1335 = vperm.xlu0 %1334, %v968
    %v1336 = vpop.permute.xlu0 %1335
    %1338 = vset.pattern.permute.xlu0 2
    %1339 = vperm.xlu0 %1338, %v969
    %v1340 = vpop.permute.xlu0 %1339
    %1342 = vset.pattern.permute.xlu0 2
    %1343 = vperm.xlu0 %1342, %v970
    %v1344 = vpop.permute.xlu0 %1343
    %v1347 = vlaneseq
    %v1348 = vshrl.u32 %v1347, 7
    %v1349 = vsub.s32 0, %v1348
    %v1350 = vrot.slane %v1281, %v1349
    %v1351 = vlaneseq
    %v1352 = vshrl.u32 %v1351, 7
    %v1353 = vsub.s32 1, %v1352
    %v1354 = vrot.slane %v1281, %v1353
    %v1357 = vmul.f32 %v1284, %v1350
    %v1358 = vmul.f32 %v1284, %v1354
    %v1359 = vmul.f32 %v1288, %v1350
    %v1360 = vmul.f32 %v1288, %v1354
    %v1361 = vmul.f32 %v1292, %v1350
    %v1362 = vmul.f32 %v1292, %v1354
    %v1363 = vmul.f32 %v1296, %v1350
    %v1364 = vmul.f32 %v1296, %v1354
    %v1365 = vmul.f32 %v1300, %v1350
    %v1366 = vmul.f32 %v1300, %v1354
    %v1367 = vmul.f32 %v1304, %v1350
    %v1368 = vmul.f32 %v1304, %v1354
    %v1369 = vmul.f32 %v1308, %v1350
    %v1370 = vmul.f32 %v1308, %v1354
    %v1371 = vmul.f32 %v1312, %v1350
    %v1372 = vmul.f32 %v1312, %v1354
    %v1373 = vmul.f32 %v1316, %v1350
    %v1374 = vmul.f32 %v1316, %v1354
    %v1375 = vmul.f32 %v1320, %v1350
    %v1376 = vmul.f32 %v1320, %v1354
    %v1377 = vmul.f32 %v1324, %v1350
    %v1378 = vmul.f32 %v1324, %v1354
    %v1379 = vmul.f32 %v1328, %v1350
    %v1380 = vmul.f32 %v1328, %v1354
    %v1381 = vmul.f32 %v1332, %v1350
    %v1382 = vmul.f32 %v1332, %v1354
    %v1383 = vmul.f32 %v1336, %v1350
    %v1384 = vmul.f32 %v1336, %v1354
    %v1385 = vmul.f32 %v1340, %v1350
    %v1386 = vmul.f32 %v1340, %v1354
    %v1387 = vmul.f32 %v1344, %v1350
    %v1388 = vmul.f32 %v1344, %v1354
    %v1389 = vadd.f32 %v1248, %v1357
    %v1390 = vadd.f32 %v1249, %v1358
    %v1391 = vadd.f32 %v1250, %v1359
    %v1392 = vadd.f32 %v1251, %v1360
    %v1393 = vadd.f32 %v1252, %v1361
    %v1394 = vadd.f32 %v1253, %v1362
    %v1395 = vadd.f32 %v1254, %v1363
    %v1396 = vadd.f32 %v1255, %v1364
    %v1397 = vadd.f32 %v1256, %v1365
    %v1398 = vadd.f32 %v1257, %v1366
    %v1399 = vadd.f32 %v1258, %v1367
    %v1400 = vadd.f32 %v1259, %v1368
    %v1401 = vadd.f32 %v1260, %v1369
    %v1402 = vadd.f32 %v1261, %v1370
    %v1403 = vadd.f32 %v1262, %v1371
    %v1404 = vadd.f32 %v1263, %v1372
    %v1405 = vadd.f32 %v1264, %v1373
    %v1406 = vadd.f32 %v1265, %v1374
    %v1407 = vadd.f32 %v1266, %v1375
    %v1408 = vadd.f32 %v1267, %v1376
    %v1409 = vadd.f32 %v1268, %v1377
    %v1410 = vadd.f32 %v1269, %v1378
    %v1411 = vadd.f32 %v1270, %v1379
    %v1412 = vadd.f32 %v1271, %v1380
    %v1413 = vadd.f32 %v1272, %v1381
    %v1414 = vadd.f32 %v1273, %v1382
    %v1415 = vadd.f32 %v1274, %v1383
    %v1416 = vadd.f32 %v1275, %v1384
    %v1417 = vadd.f32 %v1276, %v1385
    %v1418 = vadd.f32 %v1277, %v1386
    %v1419 = vadd.f32 %v1278, %v1387
    %v1420 = vadd.f32 %v1279, %v1388
    %v1453 = vunpack.c.l.b16 %v923
    %v1454 = vunpack.c.h.b16 %v923
    %v1455 = vunpack.c.l.b16 %v924
    %v1456 = vunpack.c.h.b16 %v924
    %v1457 = vunpack.c.l.b16 %v925
    %v1458 = vunpack.c.h.b16 %v925
    %v1459 = vunpack.c.l.b16 %v926
    %v1460 = vunpack.c.h.b16 %v926
    %v1461 = vunpack.c.l.b16 %v927
    %v1462 = vunpack.c.h.b16 %v927
    %v1463 = vunpack.c.l.b16 %v928
    %v1464 = vunpack.c.h.b16 %v928
    %v1465 = vunpack.c.l.b16 %v929
    %v1466 = vunpack.c.h.b16 %v929
    %v1467 = vunpack.c.l.b16 %v930
    %v1468 = vunpack.c.h.b16 %v930
    %v1469 = vunpack.c.l.b16 %v931
    %v1470 = vunpack.c.h.b16 %v931
    %v1471 = vunpack.c.l.b16 %v932
    %v1472 = vunpack.c.h.b16 %v932
    %v1473 = vunpack.c.l.b16 %v933
    %v1474 = vunpack.c.h.b16 %v933
    %v1475 = vunpack.c.l.b16 %v934
    %v1476 = vunpack.c.h.b16 %v934
    %v1477 = vunpack.c.l.b16 %v935
    %v1478 = vunpack.c.h.b16 %v935
    %v1479 = vunpack.c.l.b16 %v936
    %v1480 = vunpack.c.h.b16 %v936
    %v1481 = vunpack.c.l.b16 %v937
    %v1482 = vunpack.c.h.b16 %v937
    %v1483 = vunpack.c.l.b16 %v938
    %v1484 = vunpack.c.h.b16 %v938
    %v1485 = vunpack.c.l.b16 %v939
    %v1486 = vunpack.c.h.b16 %v939
    %v1487 = vunpack.c.l.b16 %v940
    %v1488 = vunpack.c.h.b16 %v940
    %v1489 = vunpack.c.l.b16 %v941
    %v1490 = vunpack.c.h.b16 %v941
    %v1491 = vunpack.c.l.b16 %v942
    %v1492 = vunpack.c.h.b16 %v942
    %v1493 = vunpack.c.l.b16 %v943
    %v1494 = vunpack.c.h.b16 %v943
    %v1495 = vunpack.c.l.b16 %v944
    %v1496 = vunpack.c.h.b16 %v944
    %v1497 = vunpack.c.l.b16 %v945
    %v1498 = vunpack.c.h.b16 %v945
    %v1499 = vunpack.c.l.b16 %v946
    %v1500 = vunpack.c.h.b16 %v946
    %v1501 = vunpack.c.l.b16 %v947
    %v1502 = vunpack.c.h.b16 %v947
    %v1503 = vunpack.c.l.b16 %v948
    %v1504 = vunpack.c.h.b16 %v948
    %v1505 = vunpack.c.l.b16 %v949
    %v1506 = vunpack.c.h.b16 %v949
    %v1507 = vunpack.c.l.b16 %v950
    %v1508 = vunpack.c.h.b16 %v950
    %v1509 = vunpack.c.l.b16 %v951
    %v1510 = vunpack.c.h.b16 %v951
    %v1511 = vunpack.c.l.b16 %v952
    %v1512 = vunpack.c.h.b16 %v952
    %v1513 = vunpack.c.l.b16 %v953
    %v1514 = vunpack.c.h.b16 %v953
    %v1515 = vunpack.c.l.b16 %v954
    %v1516 = vunpack.c.h.b16 %v954
    %v1517 = vpack.c.b16 %v1455, %v1453
    %v1518 = vpack.c.b16 %v1456, %v1454
    %v1519 = vpack.c.b16 %v1459, %v1457
    %v1520 = vpack.c.b16 %v1460, %v1458
    %v1521 = vpack.c.b16 %v1463, %v1461
    %v1522 = vpack.c.b16 %v1464, %v1462
    %v1523 = vpack.c.b16 %v1467, %v1465
    %v1524 = vpack.c.b16 %v1468, %v1466
    %v1525 = vpack.c.b16 %v1471, %v1469
    %v1526 = vpack.c.b16 %v1472, %v1470
    %v1527 = vpack.c.b16 %v1475, %v1473
    %v1528 = vpack.c.b16 %v1476, %v1474
    %v1529 = vpack.c.b16 %v1479, %v1477
    %v1530 = vpack.c.b16 %v1480, %v1478
    %v1531 = vpack.c.b16 %v1483, %v1481
    %v1532 = vpack.c.b16 %v1484, %v1482
    %v1533 = vpack.c.b16 %v1487, %v1485
    %v1534 = vpack.c.b16 %v1488, %v1486
    %v1535 = vpack.c.b16 %v1491, %v1489
    %v1536 = vpack.c.b16 %v1492, %v1490
    %v1537 = vpack.c.b16 %v1495, %v1493
    %v1538 = vpack.c.b16 %v1496, %v1494
    %v1539 = vpack.c.b16 %v1499, %v1497
    %v1540 = vpack.c.b16 %v1500, %v1498
    %v1541 = vpack.c.b16 %v1503, %v1501
    %v1542 = vpack.c.b16 %v1504, %v1502
    %v1543 = vpack.c.b16 %v1507, %v1505
    %v1544 = vpack.c.b16 %v1508, %v1506
    %v1545 = vpack.c.b16 %v1511, %v1509
    %v1546 = vpack.c.b16 %v1512, %v1510
    %v1547 = vpack.c.b16 %v1515, %v1513
    %v1548 = vpack.c.b16 %v1516, %v1514
    %1581 = vmatprep.subr.bf16.mxu0 %v1532
    %1582 = vmatpush1.bf16.msra.mxu0 %v1531
    %1583 = vmatprep.subr.bf16.mxu0 %v1530
    %1584 = vmatpush1.bf16.msra.mxu0 %v1529
    %1585 = vmatprep.subr.bf16.mxu0 %v1528
    %1586 = vmatpush1.bf16.msra.mxu0 %v1527
    %1587 = vmatprep.subr.bf16.mxu0 %v1526
    %1588 = vmatpush1.bf16.msra.mxu0 %v1525
    %1589 = vmatprep.subr.bf16.mxu0 %v1524
    %1590 = vmatpush1.bf16.msra.mxu0 %v1523
    %1591 = vmatprep.subr.bf16.mxu0 %v1522
    %1592 = vmatpush1.bf16.msra.mxu0 %v1521
    %1593 = vmatprep.subr.bf16.mxu0 %v1520
    %1594 = vmatpush1.bf16.msra.mxu0 %v1519
    %1595 = vmatprep.subr.bf16.mxu0 %v1518
    %1596 = vmatpush1.bf16.msra.mxu0 %v1517
    %1597 = vmatprep.subr.bf16.mxu0 %v1548
    %1598 = vmatpush2.bf16.msra.mxu0 %v1547
    %1599 = vmatprep.subr.bf16.mxu0 %v1546
    %1600 = vmatpush2.bf16.msra.mxu0 %v1545
    %1601 = vmatprep.subr.bf16.mxu0 %v1544
    %1602 = vmatpush2.bf16.msra.mxu0 %v1543
    %1603 = vmatprep.subr.bf16.mxu0 %v1542
    %1604 = vmatpush2.bf16.msra.mxu0 %v1541
    %1605 = vmatprep.subr.bf16.mxu0 %v1540
    %1606 = vmatpush2.bf16.msra.mxu0 %v1539
    %1607 = vmatprep.subr.bf16.mxu0 %v1538
    %1608 = vmatpush2.bf16.msra.mxu0 %v1537
    %1609 = vmatprep.subr.bf16.mxu0 %v1536
    %1610 = vmatpush2.bf16.msra.mxu0 %v1535
    %1611 = vmatprep.subr.bf16.mxu0 %v1534
    %1612 = vmatpush2.bf16.msra.mxu0 %v1533
    %1613 = vmatprep.mubr.bf16.mxu0 %v908
    %1614 = vmatmul.mubr.bf16.gmra.mxu0 %v907
    %v1615 = vpop.f32.mrf.mxu0
    %v1616 = vadd.f32 %v1389, %v1615
    %v1617 = vpop.f32.mrf.mxu0
    %v1618 = vadd.f32 %v1390, %v1617
    %v1619 = vpop.f32.mrf.mxu0
    %v1620 = vadd.f32 %v1391, %v1619
    %v1621 = vpop.f32.mrf.mxu0
    %v1622 = vadd.f32 %v1392, %v1621
    %1623 = vmatprep.mubr.bf16.mxu0 %v910
    %1624 = vmatmul.mubr.bf16.gmra.mxu0 %v909
    %v1625 = vpop.f32.mrf.mxu0
    %v1626 = vadd.f32 %v1393, %v1625
    %v1627 = vpop.f32.mrf.mxu0
    %v1628 = vadd.f32 %v1394, %v1627
    %v1629 = vpop.f32.mrf.mxu0
    %v1630 = vadd.f32 %v1395, %v1629
    %v1631 = vpop.f32.mrf.mxu0
    %v1632 = vadd.f32 %v1396, %v1631
    %1633 = vmatprep.mubr.bf16.mxu0 %v912
    %1634 = vmatmul.mubr.bf16.gmra.mxu0 %v911
    %v1635 = vpop.f32.mrf.mxu0
    %v1636 = vadd.f32 %v1397, %v1635
    %v1637 = vpop.f32.mrf.mxu0
    %v1638 = vadd.f32 %v1398, %v1637
    %v1639 = vpop.f32.mrf.mxu0
    %v1640 = vadd.f32 %v1399, %v1639
    %v1641 = vpop.f32.mrf.mxu0
    %v1642 = vadd.f32 %v1400, %v1641
    %1643 = vmatprep.mubr.bf16.mxu0 %v914
    %1644 = vmatmul.mubr.bf16.gmra.mxu0 %v913
    %v1645 = vpop.f32.mrf.mxu0
    %v1646 = vadd.f32 %v1401, %v1645
    %v1647 = vpop.f32.mrf.mxu0
    %v1648 = vadd.f32 %v1402, %v1647
    %v1649 = vpop.f32.mrf.mxu0
    %v1650 = vadd.f32 %v1403, %v1649
    %v1651 = vpop.f32.mrf.mxu0
    %v1652 = vadd.f32 %v1404, %v1651
    %1653 = vmatprep.mubr.bf16.mxu0 %v916
    %1654 = vmatmul.mubr.bf16.gmra.mxu0 %v915
    %v1655 = vpop.f32.mrf.mxu0
    %v1656 = vadd.f32 %v1405, %v1655
    %v1657 = vpop.f32.mrf.mxu0
    %v1658 = vadd.f32 %v1406, %v1657
    %v1659 = vpop.f32.mrf.mxu0
    %v1660 = vadd.f32 %v1407, %v1659
    %v1661 = vpop.f32.mrf.mxu0
    %v1662 = vadd.f32 %v1408, %v1661
    %1663 = vmatprep.mubr.bf16.mxu0 %v918
    %1664 = vmatmul.mubr.bf16.gmra.mxu0 %v917
    %v1665 = vpop.f32.mrf.mxu0
    %v1666 = vadd.f32 %v1409, %v1665
    %v1667 = vpop.f32.mrf.mxu0
    %v1668 = vadd.f32 %v1410, %v1667
    %v1669 = vpop.f32.mrf.mxu0
    %v1670 = vadd.f32 %v1411, %v1669
    %v1671 = vpop.f32.mrf.mxu0
    %v1672 = vadd.f32 %v1412, %v1671
    %1673 = vmatprep.mubr.bf16.mxu0 %v920
    %1674 = vmatmul.mubr.bf16.gmra.mxu0 %v919
    %v1675 = vpop.f32.mrf.mxu0
    %v1676 = vadd.f32 %v1413, %v1675
    %v1677 = vpop.f32.mrf.mxu0
    %v1678 = vadd.f32 %v1414, %v1677
    %v1679 = vpop.f32.mrf.mxu0
    %v1680 = vadd.f32 %v1415, %v1679
    %v1681 = vpop.f32.mrf.mxu0
    %v1682 = vadd.f32 %v1416, %v1681
    %1683 = vmatprep.mubr.bf16.mxu0 %v922
    %1684 = vmatmul.mubr.bf16.gmra.mxu0 %v921
    %v1685 = vpop.f32.mrf.mxu0
    %v1686 = vadd.f32 %v1417, %v1685
    %v1687 = vpop.f32.mrf.mxu0
    %v1688 = vadd.f32 %v1418, %v1687
    %v1689 = vpop.f32.mrf.mxu0
    %v1690 = vadd.f32 %v1419, %v1689
    %v1691 = vpop.f32.mrf.mxu0
    %v1692 = vadd.f32 %v1420, %v1691
    %1693 = vdwg.mxu0
    %v1694 = vmax.f32 %v1616, %v1620
    %v1695 = vmax.f32 %v1694, %v1626
    %v1696 = vmax.f32 %v1695, %v1630
    %v1697 = vmax.f32 %v1696, %v1636
    %v1698 = vmax.f32 %v1697, %v1640
    %v1699 = vmax.f32 %v1698, %v1646
    %v1700 = vmax.f32 %v1699, %v1650
    %v1701 = vrot.slane %v1700, 4
    %v1702 = vmax.f32 %v1700, %v1701
    %v1703 = vrot.slane %v1702, 2
    %v1704 = vmax.f32 %v1702, %v1703
    %v1705 = vrot.slane %v1704, 1
    %v1706 = vmax.f32 %v1704, %v1705
    %v1707 = vmax.f32 %v1618, %v1622
    %v1708 = vmax.f32 %v1707, %v1628
    %v1709 = vmax.f32 %v1708, %v1632
    %v1710 = vmax.f32 %v1709, %v1638
    %v1711 = vmax.f32 %v1710, %v1642
    %v1712 = vmax.f32 %v1711, %v1648
    %v1713 = vmax.f32 %v1712, %v1652
    %v1714 = vrot.slane %v1713, 4
    %v1715 = vmax.f32 %v1713, %v1714
    %v1716 = vrot.slane %v1715, 2
    %v1717 = vmax.f32 %v1715, %v1716
    %v1718 = vrot.slane %v1717, 1
    %v1719 = vmax.f32 %v1717, %v1718
    %v1720 = vmax.f32 %v1656, %v1660
    %v1721 = vmax.f32 %v1720, %v1666
    %v1722 = vmax.f32 %v1721, %v1670
    %v1723 = vmax.f32 %v1722, %v1676
    %v1724 = vmax.f32 %v1723, %v1680
    %v1725 = vmax.f32 %v1724, %v1686
    %v1726 = vmax.f32 %v1725, %v1690
    %v1727 = vrot.slane %v1726, 4
    %v1728 = vmax.f32 %v1726, %v1727
    %v1729 = vrot.slane %v1728, 2
    %v1730 = vmax.f32 %v1728, %v1729
    %v1731 = vrot.slane %v1730, 1
    %v1732 = vmax.f32 %v1730, %v1731
    %v1733 = vmax.f32 %v1658, %v1662
    %v1734 = vmax.f32 %v1733, %v1668
    %v1735 = vmax.f32 %v1734, %v1672
    %v1736 = vmax.f32 %v1735, %v1678
    %v1737 = vmax.f32 %v1736, %v1682
    %v1738 = vmax.f32 %v1737, %v1688
    %v1739 = vmax.f32 %v1738, %v1692
    %v1740 = vrot.slane %v1739, 4
    %v1741 = vmax.f32 %v1739, %v1740
    %v1742 = vrot.slane %v1741, 2
    %v1743 = vmax.f32 %v1741, %v1742
    %v1744 = vrot.slane %v1743, 1
    %v1745 = vmax.f32 %v1743, %v1744
    %v1746 = vmax.f32 %v1706, 0.0
    %v1747 = vmax.f32 %v1719, 0.0
    %v1748 = vmax.f32 %v1732, 0.0
    %v1749 = vmax.f32 %v1745, 0.0
    %v1750 = vpack.c.bf16 %v1746, %v1746
    %v1751 = vpack.c.bf16 %v1747, %v1747
    %v1752 = vpack.c.bf16 %v1748, %v1748
    %v1753 = vpack.c.bf16 %v1749, %v1749
    %v1754 = vld [vmem:[%s11] sm:$0xf]
    %v1755 = vld [vmem:[%s11 + $0x4] sm:$0xf]
    %v1756 = vld [vmem:[%s11 + $0x8] sm:$0xf]
    %v1757 = vld [vmem:[%s11 + $0xc] sm:$0xf]
    %v1758 = vld [vmem:[%s11 + $0x10] sm:$0xf]
    %v1759 = vld [vmem:[%s11 + $0x14] sm:$0xf]
    %v1760 = vld [vmem:[%s11 + $0x18] sm:$0xf]
    %v1761 = vld [vmem:[%s11 + $0x1c] sm:$0xf]
    %v1762 = vld [vmem:[%s11 + $0x20] sm:$0xf]
    %v1763 = vld [vmem:[%s11 + $0x24] sm:$0xf]
    %v1764 = vld [vmem:[%s11 + $0x28] sm:$0xf]
    %v1765 = vld [vmem:[%s11 + $0x2c] sm:$0xf]
    %v1766 = vld [vmem:[%s11 + $0x30] sm:$0xf]
    %v1767 = vld [vmem:[%s11 + $0x34] sm:$0xf]
    %v1768 = vld [vmem:[%s11 + $0x38] sm:$0xf]
    %v1769 = vld [vmem:[%s11 + $0x3c] sm:$0xf]
    %v1770 = vld [vmem:[%s11 + $0x40] sm:$0xf]
    %v1771 = vld [vmem:[%s11 + $0x44] sm:$0xf]
    %v1772 = vld [vmem:[%s11 + $0x48] sm:$0xf]
    %v1773 = vld [vmem:[%s11 + $0x4c] sm:$0xf]
    %v1774 = vld [vmem:[%s11 + $0x50] sm:$0xf]
    %v1775 = vld [vmem:[%s11 + $0x54] sm:$0xf]
    %v1776 = vld [vmem:[%s11 + $0x58] sm:$0xf]
    %v1777 = vld [vmem:[%s11 + $0x5c] sm:$0xf]
    %v1778 = vld [vmem:[%s11 + $0x60] sm:$0xf]
    %v1779 = vld [vmem:[%s11 + $0x64] sm:$0xf]
    %v1780 = vld [vmem:[%s11 + $0x68] sm:$0xf]
    %v1781 = vld [vmem:[%s11 + $0x6c] sm:$0xf]
    %v1782 = vld [vmem:[%s11 + $0x70] sm:$0xf]
    %v1783 = vld [vmem:[%s11 + $0x74] sm:$0xf]
    %v1784 = vld [vmem:[%s11 + $0x78] sm:$0xf]
    %v1785 = vld [vmem:[%s11 + $0x7c] sm:$0xf]
    %v1790 = vunpack.c.l.b16 %v1750
    %v1791 = vunpack.c.l.b16 %v1751
    %v1792 = vunpack.c.l.b16 %v1752
    %v1793 = vunpack.c.l.b16 %v1753
    %vm1794 = vcmask 1041409
    %v1795 = vsel %vm1794, %v1792, %v1790
    %v1796 = vsel %vm1794, %v1793, %v1791
    %v1797 = vpack.c.b16 %v1795, %v1795
    %v1798 = vpack.c.b16 %v1796, %v1796
    %v1833 = vunpack.c.l.b16 %v1754
    %v1834 = vunpack.c.l.b16 %v1755
    %v1835 = vunpack.c.l.b16 %v1756
    %v1836 = vunpack.c.l.b16 %v1757
    %v1837 = vunpack.c.l.b16 %v1758
    %v1838 = vunpack.c.l.b16 %v1759
    %v1839 = vunpack.c.l.b16 %v1760
    %v1840 = vunpack.c.l.b16 %v1761
    %v1841 = vunpack.c.l.b16 %v1762
    %v1842 = vunpack.c.l.b16 %v1763
    %v1843 = vunpack.c.l.b16 %v1764
    %v1844 = vunpack.c.l.b16 %v1765
    %v1845 = vunpack.c.l.b16 %v1766
    %v1846 = vunpack.c.l.b16 %v1767
    %v1847 = vunpack.c.l.b16 %v1768
    %v1848 = vunpack.c.l.b16 %v1769
    %v1849 = vunpack.c.l.b16 %v1770
    %v1850 = vunpack.c.l.b16 %v1771
    %v1851 = vunpack.c.l.b16 %v1772
    %v1852 = vunpack.c.l.b16 %v1773
    %v1853 = vunpack.c.l.b16 %v1774
    %v1854 = vunpack.c.l.b16 %v1775
    %v1855 = vunpack.c.l.b16 %v1776
    %v1856 = vunpack.c.l.b16 %v1777
    %v1857 = vunpack.c.l.b16 %v1778
    %v1858 = vunpack.c.l.b16 %v1779
    %v1859 = vunpack.c.l.b16 %v1780
    %v1860 = vunpack.c.l.b16 %v1781
    %v1861 = vunpack.c.l.b16 %v1782
    %v1862 = vunpack.c.l.b16 %v1783
    %v1863 = vunpack.c.l.b16 %v1784
    %v1864 = vunpack.c.l.b16 %v1785
    %v1865 = vpack.c.b16 %v1834, %v1833
    %v1866 = vpack.c.b16 %v1836, %v1835
    %v1867 = vpack.c.b16 %v1838, %v1837
    %v1868 = vpack.c.b16 %v1840, %v1839
    %v1869 = vpack.c.b16 %v1842, %v1841
    %v1870 = vpack.c.b16 %v1844, %v1843
    %v1871 = vpack.c.b16 %v1846, %v1845
    %v1872 = vpack.c.b16 %v1848, %v1847
    %v1873 = vpack.c.b16 %v1850, %v1849
    %v1874 = vpack.c.b16 %v1852, %v1851
    %v1875 = vpack.c.b16 %v1854, %v1853
    %v1876 = vpack.c.b16 %v1856, %v1855
    %v1877 = vpack.c.b16 %v1858, %v1857
    %v1878 = vpack.c.b16 %v1860, %v1859
    %v1879 = vpack.c.b16 %v1862, %v1861
    %v1880 = vpack.c.b16 %v1864, %v1863
    %1897 = vmatprep.subr.bf16.mxu0 0
    %1898 = vmatpush1.bf16.msra.mxu0 %v1872
    %1899 = vmatprep.subr.bf16.mxu0 0
    %1900 = vmatpush1.bf16.msra.mxu0 %v1871
    %1901 = vmatprep.subr.bf16.mxu0 0
    %1902 = vmatpush1.bf16.msra.mxu0 %v1870
    %1903 = vmatprep.subr.bf16.mxu0 0
    %1904 = vmatpush1.bf16.msra.mxu0 %v1869
    %1905 = vmatprep.subr.bf16.mxu0 0
    %1906 = vmatpush1.bf16.msra.mxu0 %v1868
    %1907 = vmatprep.subr.bf16.mxu0 0
    %1908 = vmatpush1.bf16.msra.mxu0 %v1867
    %1909 = vmatprep.subr.bf16.mxu0 0
    %1910 = vmatpush1.bf16.msra.mxu0 %v1866
    %1911 = vmatprep.subr.bf16.mxu0 0
    %1912 = vmatpush1.bf16.msra.mxu0 %v1865
    %1913 = vmatprep.subr.bf16.mxu0 0
    %1914 = vmatpush2.bf16.msra.mxu0 %v1880
    %1915 = vmatprep.subr.bf16.mxu0 0
    %1916 = vmatpush2.bf16.msra.mxu0 %v1879
    %1917 = vmatprep.subr.bf16.mxu0 0
    %1918 = vmatpush2.bf16.msra.mxu0 %v1878
    %1919 = vmatprep.subr.bf16.mxu0 0
    %1920 = vmatpush2.bf16.msra.mxu0 %v1877
    %1921 = vmatprep.subr.bf16.mxu0 0
    %1922 = vmatpush2.bf16.msra.mxu0 %v1876
    %1923 = vmatprep.subr.bf16.mxu0 0
    %1924 = vmatpush2.bf16.msra.mxu0 %v1875
    %1925 = vmatprep.subr.bf16.mxu0 0
    %1926 = vmatpush2.bf16.msra.mxu0 %v1874
    %1927 = vmatprep.subr.bf16.mxu0 0
    %1928 = vmatpush2.bf16.msra.mxu0 %v1873
    %1929 = vmatprep.mubr.bf16.mxu0 %v1798
    %1930 = vmatmul.mubr.bf16.gmra.mxu0 %v1797
    %v1931 = vpop.f32.mrf.mxu0
    %v1932 = vadd.f32 0.0, %v1931
    %v1933 = vpop.f32.mrf.mxu0
    %v1934 = vpop.f32.mrf.mxu0
    %v1935 = vpop.f32.mrf.mxu0
    %1936 = vdwg.mxu0
    %vm1937 = vcmask 25600
    %v1938 = vsel %vm1937, %v1932, -inf
    %1939 = vmax.xlane.f32.xlu0 %v1938
    %v1940 = vpop.xlane.xlu0 %1939
    %v1941 = vsub.f32 %v1932, %v1940
    %v1942 = vmul.f32 %v1941, 1.442695
    %v1943 = vpow.pop %v1942
    %v1944 = vsel %vm1937, %v1943, 0.0
    %1945 = vadd.xlane.f32.xlu0 %v1944
    %v1946 = vpop.xlane.xlu0 %1945
    %v1947 = vrcp.pop %v1946
    %v1948 = vmul.f32 %v1943, %v1947
    %v1949 = vld [vmem:[%s12] sm:$0xff]
    %v1951 = vcombine.high %v1949, %v1949
    %vm1952 = vcmask 31744
    %v1954 = vsel %vm1952, %v1948, 0
    %vm1956 = vcmask 1043456
    %v1957 = vsel %vm1956, %v1949, 0
    %v1959 = vsel %vm1956, %v1951, 0
    %1961 = vmatprep.subr.mxu0 0.0
    %1962 = vmatpush1.msra.mxu0 0.0
    %1963 = vmatprep.subr.mxu0 0.0
    %1964 = vmatpush1.msra.mxu0 0.0
    %1965 = vmatprep.subr.mxu0 0.0
    %1966 = vmatpush1.msra.mxu0 0.0
    %1967 = vmatprep.subr.mxu0 0.0
    %1968 = vmatpush1.msra.mxu0 0.0
    %1969 = vmatprep.subr.mxu0 0.0
    %1970 = vmatpush1.msra.mxu0 0.0
    %1971 = vmatprep.subr.mxu0 0.0
    %1972 = vmatpush1.msra.mxu0 0.0
    %1973 = vmatprep.subr.mxu0 0.0
    %1974 = vmatpush1.msra.mxu0 0.0
    %1975 = vmatprep.subr.mxu0 0.0
    %1976 = vmatpush1.msra.mxu0 0.0
    %1977 = vmatprep.subr.mxu0 0.0
    %1978 = vmatpush1.msra.mxu0 0.0
    %1979 = vmatprep.subr.mxu0 0.0
    %1980 = vmatpush1.msra.mxu0 0.0
    %1981 = vmatprep.subr.mxu0 0.0
    %1982 = vmatpush1.msra.mxu0 0.0
    %1983 = vmatprep.subr.mxu0 0.0
    %1984 = vmatpush1.msra.mxu0 0.0
    %1985 = vmatprep.subr.mxu0 0.0
    %1986 = vmatpush1.msra.mxu0 0.0
    %1987 = vmatprep.subr.mxu0 0.0
    %1988 = vmatpush1.msra.mxu0 0.0
    %1989 = vmatprep.subr.mxu0 0.0
    %1990 = vmatpush1.msra.mxu0 0.0
    %1991 = vmatprep.subr.mxu0 %v1959
    %1992 = vmatpush1.msra.mxu0 %v1957
    %1993 = vmatprep.subr.mxu0 0.0
    %1994 = vmatpush2.msra.mxu0 0.0
    %1995 = vmatprep.subr.mxu0 0.0
    %1996 = vmatpush2.msra.mxu0 0.0
    %1997 = vmatprep.subr.mxu0 0.0
    %1998 = vmatpush2.msra.mxu0 0.0
    %1999 = vmatprep.subr.mxu0 0.0
    %2000 = vmatpush2.msra.mxu0 0.0
    %2001 = vmatprep.subr.mxu0 0.0
    %2002 = vmatpush2.msra.mxu0 0.0
    %2003 = vmatprep.subr.mxu0 0.0
    %2004 = vmatpush2.msra.mxu0 0.0
    %2005 = vmatprep.subr.mxu0 0.0
    %2006 = vmatpush2.msra.mxu0 0.0
    %2007 = vmatprep.subr.mxu0 0.0
    %2008 = vmatpush2.msra.mxu0 0.0
    %2009 = vmatprep.subr.mxu0 0.0
    %2010 = vmatpush2.msra.mxu0 0.0
    %2011 = vmatprep.subr.mxu0 0.0
    %2012 = vmatpush2.msra.mxu0 0.0
    %2013 = vmatprep.subr.mxu0 0.0
    %2014 = vmatpush2.msra.mxu0 0.0
    %2015 = vmatprep.subr.mxu0 0.0
    %2016 = vmatpush2.msra.mxu0 0.0
    %2017 = vmatprep.subr.mxu0 0.0
    %2018 = vmatpush2.msra.mxu0 0.0
    %2019 = vmatprep.subr.mxu0 0.0
    %2020 = vmatpush2.msra.mxu0 0.0
    %2021 = vmatprep.subr.mxu0 0.0
    %2022 = vmatpush2.msra.mxu0 0.0
    %2023 = vmatprep.subr.mxu0 0.0
    %2024 = vmatpush2.msra.mxu0 0.0
    %2025 = vmatprep.mubr.f32.mxu0 0.0
    %2026 = vmatmul.mubr.f32.gmra.mxu0 %v1954
    %v2027 = vpop.f32.mrf.mxu0
    %v2028 = vadd.f32 0.0, %v2027
    %v2029 = vpop.f32.mrf.mxu0
    %v2030 = vadd.f32 0.0, %v2029
    %2031 = vdwg.mxu0
    %v2036 = vsel %vm1794, %v1748, %v1746
    %v2037 = vsel %vm1794, %v1749, %v1747
    %v2040 = vmul.f32 %v2028, %v2036
    %v2041 = vmul.f32 %v2030, %v2037
    %v2042 = vld [vmem:[%s13] sm:$0xff]
    %v2043 = vld [vmem:[%s13 + $0x8] sm:$0xff]
    %v2044 = vld [vmem:[%s13 + $0x10] sm:$0xff]
    %v2045 = vld [vmem:[%s13 + $0x18] sm:$0xff]
    %v2046 = vld [vmem:[%s13 + $0x20] sm:$0xff]
    %v2047 = vld [vmem:[%s13 + $0x28] sm:$0xff]
    %v2048 = vld [vmem:[%s13 + $0x30] sm:$0xff]
    %v2049 = vld [vmem:[%s13 + $0x38] sm:$0xff]
    %v2050 = vld [vmem:[%s13 + $0x40] sm:$0xff]
    %v2051 = vld [vmem:[%s13 + $0x48] sm:$0xff]
    %v2052 = vld [vmem:[%s13 + $0x50] sm:$0xff]
    %v2053 = vld [vmem:[%s13 + $0x58] sm:$0xff]
    %v2054 = vld [vmem:[%s13 + $0x60] sm:$0xff]
    %v2055 = vld [vmem:[%s13 + $0x68] sm:$0xff]
    %v2056 = vld [vmem:[%s13 + $0x70] sm:$0xff]
    %v2057 = vld [vmem:[%s13 + $0x78] sm:$0xff]
    %v2058 = vld [vmem:[%s13 + $0x80] sm:$0xff]
    %v2059 = vld [vmem:[%s13 + $0x88] sm:$0xff]
    %v2060 = vld [vmem:[%s13 + $0x90] sm:$0xff]
    %v2061 = vld [vmem:[%s13 + $0x98] sm:$0xff]
    %v2062 = vld [vmem:[%s13 + $0xa0] sm:$0xff]
    %v2063 = vld [vmem:[%s13 + $0xa8] sm:$0xff]
    %v2064 = vld [vmem:[%s13 + $0xb0] sm:$0xff]
    %v2065 = vld [vmem:[%s13 + $0xb8] sm:$0xff]
    %v2066 = vld [vmem:[%s13 + $0xc0] sm:$0xff]
    %v2067 = vld [vmem:[%s13 + $0xc8] sm:$0xff]
    %v2068 = vld [vmem:[%s13 + $0xd0] sm:$0xff]
    %v2069 = vld [vmem:[%s13 + $0xd8] sm:$0xff]
    %v2070 = vld [vmem:[%s13 + $0xe0] sm:$0xff]
    %v2071 = vld [vmem:[%s13 + $0xe8] sm:$0xff]
    %v2072 = vld [vmem:[%s13 + $0xf0] sm:$0xff]
    %v2073 = vld [vmem:[%s13 + $0xf8] sm:$0xff]
    %2074 = vmatprep.subr.mxu0 0.0
    %2075 = vmatpush1.msra.mxu0 %v2057
    %2076 = vmatprep.subr.mxu0 0.0
    %2077 = vmatpush1.msra.mxu0 %v2056
    %2078 = vmatprep.subr.mxu0 0.0
    %2079 = vmatpush1.msra.mxu0 %v2055
    %2080 = vmatprep.subr.mxu0 0.0
    %2081 = vmatpush1.msra.mxu0 %v2054
    %2082 = vmatprep.subr.mxu0 0.0
    %2083 = vmatpush1.msra.mxu0 %v2053
    %2084 = vmatprep.subr.mxu0 0.0
    %2085 = vmatpush1.msra.mxu0 %v2052
    %2086 = vmatprep.subr.mxu0 0.0
    %2087 = vmatpush1.msra.mxu0 %v2051
    %2088 = vmatprep.subr.mxu0 0.0
    %2089 = vmatpush1.msra.mxu0 %v2050
    %2090 = vmatprep.subr.mxu0 0.0
    %2091 = vmatpush1.msra.mxu0 %v2049
    %2092 = vmatprep.subr.mxu0 0.0
    %2093 = vmatpush1.msra.mxu0 %v2048
    %2094 = vmatprep.subr.mxu0 0.0
    %2095 = vmatpush1.msra.mxu0 %v2047
    %2096 = vmatprep.subr.mxu0 0.0
    %2097 = vmatpush1.msra.mxu0 %v2046
    %2098 = vmatprep.subr.mxu0 0.0
    %2099 = vmatpush1.msra.mxu0 %v2045
    %2100 = vmatprep.subr.mxu0 0.0
    %2101 = vmatpush1.msra.mxu0 %v2044
    %2102 = vmatprep.subr.mxu0 0.0
    %2103 = vmatpush1.msra.mxu0 %v2043
    %2104 = vmatprep.subr.mxu0 0.0
    %2105 = vmatpush1.msra.mxu0 %v2042
    %2106 = vmatprep.subr.mxu0 0.0
    %2107 = vmatpush2.msra.mxu0 %v2073
    %2108 = vmatprep.subr.mxu0 0.0
    %2109 = vmatpush2.msra.mxu0 %v2072
    %2110 = vmatprep.subr.mxu0 0.0
    %2111 = vmatpush2.msra.mxu0 %v2071
    %2112 = vmatprep.subr.mxu0 0.0
    %2113 = vmatpush2.msra.mxu0 %v2070
    %2114 = vmatprep.subr.mxu0 0.0
    %2115 = vmatpush2.msra.mxu0 %v2069
    %2116 = vmatprep.subr.mxu0 0.0
    %2117 = vmatpush2.msra.mxu0 %v2068
    %2118 = vmatprep.subr.mxu0 0.0
    %2119 = vmatpush2.msra.mxu0 %v2067
    %2120 = vmatprep.subr.mxu0 0.0
    %2121 = vmatpush2.msra.mxu0 %v2066
    %2122 = vmatprep.subr.mxu0 0.0
    %2123 = vmatpush2.msra.mxu0 %v2065
    %2124 = vmatprep.subr.mxu0 0.0
    %2125 = vmatpush2.msra.mxu0 %v2064
    %2126 = vmatprep.subr.mxu0 0.0
    %2127 = vmatpush2.msra.mxu0 %v2063
    %2128 = vmatprep.subr.mxu0 0.0
    %2129 = vmatpush2.msra.mxu0 %v2062
    %2130 = vmatprep.subr.mxu0 0.0
    %2131 = vmatpush2.msra.mxu0 %v2061
    %2132 = vmatprep.subr.mxu0 0.0
    %2133 = vmatpush2.msra.mxu0 %v2060
    %2134 = vmatprep.subr.mxu0 0.0
    %2135 = vmatpush2.msra.mxu0 %v2059
    %2136 = vmatprep.subr.mxu0 0.0
    %2137 = vmatpush2.msra.mxu0 %v2058
    %2138 = vmatprep.mubr.f32.mxu0 %v2041
    %2139 = vmatmul.mubr.f32.gmra.mxu0 %v2040
    %v2140 = vpop.f32.mrf.mxu0
    %v2141 = vadd.f32 0.0, %v2140
    %v2142 = vpop.f32.mrf.mxu0
    %2143 = vdwg.mxu0
    %v2144 = vpack.c.bf16 %v2141, %v2141
    %v2145 = vld [vmem:[%s14] sm:$0xf]
    %v2146 = vld [vmem:[%s14 + $0x4] sm:$0xf]
    %v2147 = vld [vmem:[%s14 + $0x8] sm:$0xf]
    %v2148 = vld [vmem:[%s14 + $0xc] sm:$0xf]
    %v2149 = vld [vmem:[%s14 + $0x10] sm:$0xf]
    %v2150 = vld [vmem:[%s14 + $0x14] sm:$0xf]
    %v2151 = vld [vmem:[%s14 + $0x18] sm:$0xf]
    %v2152 = vld [vmem:[%s14 + $0x1c] sm:$0xf]
    %v2153 = vld [vmem:[%s15] sm:$0x1]
    %v2155 = vlaneseq
    %v2156 = vshrl.u32 %v2155, 7
    %v2157 = vsub.s32 0, %v2156
    %v2158 = vrot.slane %v2153, %v2157
    %v2168 = vunpack.c.l.b16 %v2145
    %v2169 = vunpack.c.l.b16 %v2146
    %v2170 = vunpack.c.l.b16 %v2147
    %v2171 = vunpack.c.l.b16 %v2148
    %v2172 = vunpack.c.l.b16 %v2149
    %v2173 = vunpack.c.l.b16 %v2150
    %v2174 = vunpack.c.l.b16 %v2151
    %v2175 = vunpack.c.l.b16 %v2152
    %v2176 = vpack.c.b16 %v2169, %v2168
    %v2177 = vpack.c.b16 %v2171, %v2170
    %v2178 = vpack.c.b16 %v2173, %v2172
    %v2179 = vpack.c.b16 %v2175, %v2174
    %vm2184 = vcmask 523264
    %v2186 = vsel %vm2184, %v2144, 0
    %2188 = vmatprep.subr.bf16.mxu0 0
    %2189 = vmatpush1.bf16.msra.mxu0 0
    %2190 = vmatprep.subr.bf16.mxu0 0
    %2191 = vmatpush1.bf16.msra.mxu0 0
    %2192 = vmatprep.subr.bf16.mxu0 0
    %2193 = vmatpush1.bf16.msra.mxu0 0
    %2194 = vmatprep.subr.bf16.mxu0 0
    %2195 = vmatpush1.bf16.msra.mxu0 0
    %2196 = vmatprep.subr.bf16.mxu0 0
    %2197 = vmatpush1.bf16.msra.mxu0 %v2179
    %2198 = vmatprep.subr.bf16.mxu0 0
    %2199 = vmatpush1.bf16.msra.mxu0 %v2178
    %2200 = vmatprep.subr.bf16.mxu0 0
    %2201 = vmatpush1.bf16.msra.mxu0 %v2177
    %2202 = vmatprep.subr.bf16.mxu0 0
    %2203 = vmatpush1.bf16.msra.mxu0 %v2176
    %2204 = vmatprep.subr.bf16.mxu0 0
    %2205 = vmatpush2.bf16.msra.mxu0 0
    %2206 = vmatprep.subr.bf16.mxu0 0
    %2207 = vmatpush2.bf16.msra.mxu0 0
    %2208 = vmatprep.subr.bf16.mxu0 0
    %2209 = vmatpush2.bf16.msra.mxu0 0
    %2210 = vmatprep.subr.bf16.mxu0 0
    %2211 = vmatpush2.bf16.msra.mxu0 0
    %2212 = vmatprep.subr.bf16.mxu0 0
    %2213 = vmatpush2.bf16.msra.mxu0 0
    %2214 = vmatprep.subr.bf16.mxu0 0
    %2215 = vmatpush2.bf16.msra.mxu0 0
    %2216 = vmatprep.subr.bf16.mxu0 0
    %2217 = vmatpush2.bf16.msra.mxu0 0
    %2218 = vmatprep.subr.bf16.mxu0 0
    %2219 = vmatpush2.bf16.msra.mxu0 0
    %2220 = vmatprep.mubr.bf16.mxu0 0
    %2221 = vmatmul.mubr.bf16.gmra.mxu0 %v2186
    %v2222 = vpop.f32.mrf.mxu0
    %v2223 = vadd.f32 %v2158, %v2222
    %v2224 = vpop.f32.mrf.mxu0
    %v2225 = vpop.f32.mrf.mxu0
    %v2226 = vpop.f32.mrf.mxu0
    %2227 = vdwg.mxu0
    %v2228 = vmax.f32 %v2223, 0.0
    %v2229 = vpack.c.bf16 %v2228, %v2228
    %v2230 = vld [vmem:[%s16] sm:$0xf]
    %v2231 = vld [vmem:[%s16 + $0x4] sm:$0xf]
    %v2232 = vld [vmem:[%s16 + $0x8] sm:$0xf]
    %v2233 = vld [vmem:[%s16 + $0xc] sm:$0xf]
    %v2234 = vld [vmem:[%s17] sm:$0x1]
    %v2236 = vlaneseq
    %v2237 = vshrl.u32 %v2236, 7
    %v2238 = vsub.s32 0, %v2237
    %v2239 = vrot.slane %v2234, %v2238
    %v2245 = vunpack.c.l.b16 %v2230
    %v2246 = vunpack.c.l.b16 %v2231
    %v2247 = vunpack.c.l.b16 %v2232
    %v2248 = vunpack.c.l.b16 %v2233
    %v2249 = vpack.c.b16 %v2246, %v2245
    %v2250 = vpack.c.b16 %v2248, %v2247
    %vm2253 = vcmask 261120
    %v2255 = vsel %vm2253, %v2229, 0
    %2257 = vmatprep.subr.bf16.mxu0 0
    %2258 = vmatpush1.bf16.msra.mxu0 0
    %2259 = vmatprep.subr.bf16.mxu0 0
    %2260 = vmatpush1.bf16.msra.mxu0 0
    %2261 = vmatprep.subr.bf16.mxu0 0
    %2262 = vmatpush1.bf16.msra.mxu0 0
    %2263 = vmatprep.subr.bf16.mxu0 0
    %2264 = vmatpush1.bf16.msra.mxu0 0
    %2265 = vmatprep.subr.bf16.mxu0 0
    %2266 = vmatpush1.bf16.msra.mxu0 0
    %2267 = vmatprep.subr.bf16.mxu0 0
    %2268 = vmatpush1.bf16.msra.mxu0 0
    %2269 = vmatprep.subr.bf16.mxu0 0
    %2270 = vmatpush1.bf16.msra.mxu0 %v2250
    %2271 = vmatprep.subr.bf16.mxu0 0
    %2272 = vmatpush1.bf16.msra.mxu0 %v2249
    %2273 = vmatprep.subr.bf16.mxu0 0
    %2274 = vmatpush2.bf16.msra.mxu0 0
    %2275 = vmatprep.subr.bf16.mxu0 0
    %2276 = vmatpush2.bf16.msra.mxu0 0
    %2277 = vmatprep.subr.bf16.mxu0 0
    %2278 = vmatpush2.bf16.msra.mxu0 0
    %2279 = vmatprep.subr.bf16.mxu0 0
    %2280 = vmatpush2.bf16.msra.mxu0 0
    %2281 = vmatprep.subr.bf16.mxu0 0
    %2282 = vmatpush2.bf16.msra.mxu0 0
    %2283 = vmatprep.subr.bf16.mxu0 0
    %2284 = vmatpush2.bf16.msra.mxu0 0
    %2285 = vmatprep.subr.bf16.mxu0 0
    %2286 = vmatpush2.bf16.msra.mxu0 0
    %2287 = vmatprep.subr.bf16.mxu0 0
    %2288 = vmatpush2.bf16.msra.mxu0 0
    %2289 = vmatprep.mubr.bf16.mxu0 0
    %2290 = vmatmul.mubr.bf16.gmra.mxu0 %v2255
    %v2291 = vpop.f32.mrf.mxu0
    %v2292 = vadd.f32 %v2239, %v2291
    %v2293 = vpop.f32.mrf.mxu0
    %v2294 = vpop.f32.mrf.mxu0
    %v2295 = vpop.f32.mrf.mxu0
    %2296 = vdwg.mxu0
    %2297 = vst [vmem:[#allocation7] sm:$0x3] %v2292
    // Predicated region
    $region82: #{tpu_custom_call.1} parent=1 // pred_check
      _
    $region83: #{tpu_custom_call.1} parent=1 // pred_check_branch
      %2299 = sbr.rel (0) target = $region85
    $region84: #{tpu_custom_call.1} parent=1 // pred_region
      %s2301 = ssub.s32 32, 32
      %2302 = vsyncadd [#allocation4], %s2301
      %s2304 = sshll.u32 [#allocation7], 4
      %s2305 = int_to_ptr.vmem [resolvable:$true] %s2304
      %2307 = dma.vmem_to_hbm [thread:$0]  %s2305, 32, %s18, [#allocation4]
    $region85: #{tpu_custom_call.1} parent=1 // pred_fallthru
      _
    // Predicated region
    $region86: #{tpu_custom_call.1} parent=1 // pred_check
      _
    $region87: #{tpu_custom_call.1} parent=1 // pred_check_branch
      %2309 = sbr.rel (0) target = $region89
    $region88: #{tpu_custom_call.1} parent=1 // pred_region
      %2310 = dma.done [#allocation4], 32
    $region89: #{tpu_custom_call.1} parent=1 // pred_fallthru
      _
    %2311 = vsyncpa [#allocation3], 1
    %2312 = vsyncpa [#allocation6], 1
    %2313 = vsyncpa [#allocation4], 1

</llo_original>
